<compile_context>
chip_gen: v5e
topology: v5e:2x2
jax: 0.10.0
libtpu: 0.0.40
codegen_flags: <defaults>
</compile_context>

<pallas_src>
import functools

import jax
import jax.numpy as jnp
from jax.experimental import pallas as pl
from jax.experimental.pallas import tpu as pltpu


def _softplus(x):
    # numerically-stable softplus with a single exp + log1p (EUP-friendly)
    return jnp.maximum(x, 0.0) + jnp.log1p(jnp.exp(-jnp.abs(x)))


def _round_up(x, m):
    return (x + m - 1) // m * m


def _choose_block_batch(batch, max_block, min_grid_steps, min_block):
    """Largest multiple-of-8 batch tile <= max_block, shrunk (halved) until the
    grid has at least `min_grid_steps` steps (pipelining + megacore sharding),
    but never below `min_block` rows."""
    tb = _round_up(min(max_block, _round_up(batch, 8)), 8)
    while tb // 2 >= min_block and pl.cdiv(batch, tb) < min_grid_steps:
        tb = _round_up(tb // 2, 8)
    return tb


def vae_forward_kernel(
    x_ref, eps_ref,
    w_in_ref, b_in_ref,          # encoder.input          (image_dim -> hidden)
    w_head_ref, b_head_ref,      # fused mean/std heads   (hidden -> 2*zdim)
    w_d1_ref, b_d1_ref,          # decoder.input          (zdim -> hidden)
    w_d2_ref, b_d2_ref,          # decoder.hidden         (hidden -> image_dim)
    xout_ref, ms_ref,            # x_recon, [mean | std]
    *, zdim,
):
    # ---------------- Encoder ----------------
    x = x_ref[...].astype(jnp.bfloat16)
    h = jnp.tanh(
        jnp.dot(x, w_in_ref[...], preferred_element_type=jnp.float32)
        + b_in_ref[...]
    )
    head = (
        jnp.dot(h.astype(jnp.bfloat16), w_head_ref[...],
                preferred_element_type=jnp.float32)
        + b_head_ref[...]
    )

    # softplus over the full (TB, 2*zdim) tile; build [mean | std] with a lane
    # select instead of slice + concatenate (avoids cross-lane relayout).
    sp = _softplus(head)
    lane = jax.lax.broadcasted_iota(jnp.int32, head.shape, 1)
    ms_ref[...] = jnp.where(lane >= zdim, sp, head).astype(ms_ref.dtype)

    # ---------------- rsample: z = mean + std * eps ----------------
    mean = head[:, :zdim]
    std = sp[:, zdim:]
    z = mean + std * eps_ref[...]

    # ---------------- Decoder ----------------
    d = jnp.tanh(
        jnp.dot(z.astype(jnp.bfloat16), w_d1_ref[...],
                preferred_element_type=jnp.float32)
        + b_d1_ref[...]
    )
    x_rec = jnp.tanh(
        jnp.dot(d.astype(jnp.bfloat16), w_d2_ref[...],
                preferred_element_type=jnp.float32)
        + b_d2_ref[...]
    )
    xout_ref[...] = x_rec.astype(xout_ref.dtype)


def prepare_params(params):
    """One-time parameter prep (hoisted off the per-call hot path):
    fuse mean/std heads, cast matmul weights to bf16, biases -> (1, out) f32."""
    (w_in, b_in, w_mu, b_mu, w_sd, b_sd, w_d1, b_d1, w_d2, b_d2) = params
    w_head = jnp.concatenate([w_mu, w_sd], axis=1)
    b_head = jnp.concatenate(
        [b_mu.reshape(1, -1), b_sd.reshape(1, -1)], axis=1)
    bf = lambda a: a.astype(jnp.bfloat16)
    f32row = lambda b: b.reshape(1, -1).astype(jnp.float32)
    return (
        bf(w_in), f32row(b_in),
        bf(w_head), b_head.astype(jnp.float32),
        bf(w_d1), f32row(b_d1),
        bf(w_d2), f32row(b_d2),
    )


def vae_forward(images, eps, kernel_params, *, block_batch=1024,
                out_dtype=jnp.bfloat16, min_grid_steps=4, min_block=128):
    """images: (batch, image_dim); eps: (batch, zdim).

    kernel_params: output of prepare_params().
    Returns (x_recon[out_dtype], mean[f32], std[f32]).
    """
    batch, image_dim = images.shape
    zdim = eps.shape[1]
    (w_in, b_in, w_head, b_head, w_d1, b_d1, w_d2, b_d2) = kernel_params

    TB = _choose_block_batch(batch, block_batch, min_grid_steps, min_block)
    grid = (pl.cdiv(batch, TB),)   # ragged last tile handled by Pallas masking

    tile = lambda cols: pl.BlockSpec((TB, cols), lambda i: (i, 0))
    # Weights/biases: full-array blocks, same block every grid step -> they
    # stay resident in VMEM across the whole grid (one DMA total).
    resident = lambda a: pl.BlockSpec(a.shape, lambda i: (0, 0))

    in_specs = [
        tile(image_dim),                 # x tile
        tile(zdim),                      # eps tile
        resident(w_in), resident(b_in),
        resident(w_head), resident(b_head),
        resident(w_d1), resident(b_d1),
        resident(w_d2), resident(b_d2),
    ]
    out_specs = (
        tile(image_dim),                 # x_recon tile
        tile(2 * zdim),                  # [mean | std] tile
    )
    out_shapes = (
        jax.ShapeDtypeStruct((batch, image_dim), out_dtype),
        jax.ShapeDtypeStruct((batch, 2 * zdim), jnp.float32),
    )

    kernel = functools.partial(vae_forward_kernel, zdim=zdim)

    x_rec, mean_std = pl.pallas_call(
        kernel,
        out_shape=out_shapes,
        grid=grid,
        in_specs=in_specs,
        out_specs=out_specs,
        compiler_params=pltpu.CompilerParams(
            dimension_semantics=("parallel",),
            vmem_limit_bytes=32 * 1024 * 1024,   # headroom for big tiles on v5e
        ),
    )(images, eps, w_in, b_in, w_head, b_head, w_d1, b_d1, w_d2, b_d2)

    mean = mean_std[:, :zdim]
    std = mean_std[:, zdim:]
    return x_rec, mean, std


def init_params(key, image_dim, hidden_dim, zdim):
    """Matches _init_weights: weights ~ N(0, 0.01), biases zero.

    Weights are stored already transposed: (in_dim, out_dim)."""
    ks = jax.random.split(key, 5)
    std = 0.01

    def w(k, shape):
        return (std * jax.random.normal(k, shape)).astype(jnp.float32)

    w_in = w(ks[0], (image_dim, hidden_dim))
    b_in = jnp.zeros((1, hidden_dim), jnp.float32)
    w_mu = w(ks[1], (hidden_dim, zdim))
    b_mu = jnp.zeros((1, zdim), jnp.float32)
    w_sd = w(ks[2], (hidden_dim, zdim))
    b_sd = jnp.zeros((1, zdim), jnp.float32)
    w_d1 = w(ks[3], (zdim, hidden_dim))
    b_d1 = jnp.zeros((1, hidden_dim), jnp.float32)
    w_d2 = w(ks[4], (hidden_dim, image_dim))
    b_d2 = jnp.zeros((1, image_dim), jnp.float32)
    return (w_in, b_in, w_mu, b_mu, w_sd, b_sd, w_d1, b_d1, w_d2, b_d2)


def vae_forward_ref(images, eps, params):
    """Pure-JAX reference mirroring the kernel math (bf16 MXU operands,
    f32 accumulation) for correctness checking."""
    (w_in, b_in, w_mu, b_mu, w_sd, b_sd, w_d1, b_d1, w_d2, b_d2) = params
    bf = jnp.bfloat16

    def mm(a, w):
        return jnp.dot(a.astype(bf), w.astype(bf),
                       preferred_element_type=jnp.float32)

    h = jnp.tanh(mm(images, w_in) + b_in)
    mean = mm(h, w_mu) + b_mu
    std = jax.nn.softplus(mm(h, w_sd) + b_sd)
    z = mean + std * eps
    d = jnp.tanh(mm(z, w_d1) + b_d1)
    x_rec = jnp.tanh(mm(d, w_d2) + b_d2)
    return x_rec, mean, std


if __name__ == "__main__":
    # small shapes consistent with the module:
    # image_dim = C*H*W = 4*8*8 = 256, hidden_dim = 128, zdim = 32.
    # batch = 384 -> TB = 192, grid = (2,): exercises multi-step grid with no
    # padding and both TensorCores on v7x.
    batch, C, H, W = 384, 4, 8, 8
    image_dim = C * H * W
    hidden_dim = 128
    zdim = 32

    key = jax.random.PRNGKey(0)
    k_img, k_eps, k_par = jax.random.split(key, 3)

    images_nchw = jax.random.uniform(k_img, (batch, C, H, W), jnp.float32)
    images = images_nchw.reshape(batch, image_dim)      # flatten, as required
    eps = jax.random.normal(k_eps, (batch, zdim), jnp.float32)

    params = init_params(k_par, image_dim, hidden_dim, zdim)
    kernel_params = prepare_params(params)              # one-time prep
    kernel_params = jax.block_until_ready(kernel_params)

    x_rec, mean, std = vae_forward(images, eps, kernel_params)
    jax.block_until_ready((x_rec, mean, std))

    x_ref, m_ref, s_ref = vae_forward_ref(images, eps, params)
    # x_recon is emitted in bf16 -> looser tolerance; mean/std are f32.
    assert jnp.allclose(x_rec.astype(jnp.float32), x_ref,
                        atol=1e-2, rtol=2e-2), "x mismatch"
    assert jnp.allclose(mean, m_ref, atol=2e-3, rtol=1e-2), "mean mismatch"
    assert jnp.allclose(std, s_ref, atol=2e-3, rtol=1e-2), "std mismatch"

    print("KERNEL_OK")
</pallas_src>

<mosaic_0001>
module attributes {stable_mosaic.version = 11 : i64} {
  func.func @vae_forward_kernel(%arg0: i32, %arg1: memref<192x256xf32, #tpu.memory_space<vmem>>, %arg2: memref<192x32xf32, #tpu.memory_space<vmem>>, %arg3: memref<256x128xbf16, #tpu.memory_space<vmem>>, %arg4: memref<1x128xf32, #tpu.memory_space<vmem>>, %arg5: memref<128x64xbf16, #tpu.memory_space<vmem>>, %arg6: memref<1x64xf32, #tpu.memory_space<vmem>>, %arg7: memref<32x128xbf16, #tpu.memory_space<vmem>>, %arg8: memref<1x128xf32, #tpu.memory_space<vmem>>, %arg9: memref<128x256xbf16, #tpu.memory_space<vmem>>, %arg10: memref<1x256xf32, #tpu.memory_space<vmem>>, %arg11: memref<192x256xbf16, #tpu.memory_space<vmem>>, %arg12: memref<192x64xf32, #tpu.memory_space<vmem>>) attributes {dimension_semantics = [#tpu.dimension_semantics<parallel>], iteration_bounds = array<i64: 2>, scalar_prefetch = 0 : i64, scratch_operands = 0 : i64, tpu.core_type = #tpu.core_type<tc>, window_params = [{transform_indices = @transform_0, window_bounds = array<i64: 192, 256>}, {transform_indices = @transform_1, window_bounds = array<i64: 192, 32>}, {pipeline_mode = #tpu.pipeline_mode<synchronous>, transform_indices = @transform_2, window_bounds = array<i64: 256, 128>}, {pipeline_mode = #tpu.pipeline_mode<synchronous>, transform_indices = @transform_3, window_bounds = array<i64: 1, 128>}, {pipeline_mode = #tpu.pipeline_mode<synchronous>, transform_indices = @transform_4, window_bounds = array<i64: 128, 64>}, {pipeline_mode = #tpu.pipeline_mode<synchronous>, transform_indices = @transform_5, window_bounds = array<i64: 1, 64>}, {pipeline_mode = #tpu.pipeline_mode<synchronous>, transform_indices = @transform_6, window_bounds = array<i64: 32, 128>}, {pipeline_mode = #tpu.pipeline_mode<synchronous>, transform_indices = @transform_7, window_bounds = array<i64: 1, 128>}, {pipeline_mode = #tpu.pipeline_mode<synchronous>, transform_indices = @transform_8, window_bounds = array<i64: 128, 256>}, {pipeline_mode = #tpu.pipeline_mode<synchronous>, transform_indices = @transform_9, window_bounds = array<i64: 1, 256>}, {transform_indices = @transform_10, window_bounds = array<i64: 192, 256>}, {transform_indices = @transform_11, window_bounds = array<i64: 192, 64>}]} {
    %c0 = arith.constant 0 : index
    %c0_0 = arith.constant 0 : index
    %0 = vector.load %arg1[%c0, %c0_0] : memref<192x256xf32, #tpu.memory_space<vmem>>, vector<192x256xf32>
    %1 = arith.truncf %0 : vector<192x256xf32> to vector<192x256xbf16>
    %c0_1 = arith.constant 0 : index
    %c0_2 = arith.constant 0 : index
    %2 = vector.load %arg3[%c0_1, %c0_2] : memref<256x128xbf16, #tpu.memory_space<vmem>>, vector<256x128xbf16>
    %cst = arith.constant dense<0.000000e+00> : vector<192x128xf32>
    %3 = tpu.matmul %1, %2, %cst {dimension_numbers = #tpu.dot_dimension_numbers<[1], [0], [0], [1], [0, 0, 1, 1], [], []>} : vector<192x256xbf16>, vector<256x128xbf16>, vector<192x128xf32> -> vector<192x128xf32>
    %c0_3 = arith.constant 0 : index
    %c0_4 = arith.constant 0 : index
    %4 = vector.load %arg4[%c0_3, %c0_4] : memref<1x128xf32, #tpu.memory_space<vmem>>, vector<1x128xf32>
    %5 = vector.broadcast %4 : vector<1x128xf32> to vector<192x128xf32>
    %6 = arith.addf %3, %5 : vector<192x128xf32>
    %7 = math.tanh %6 : vector<192x128xf32>
    %8 = arith.truncf %7 : vector<192x128xf32> to vector<192x128xbf16>
    %c0_5 = arith.constant 0 : index
    %c0_6 = arith.constant 0 : index
    %9 = vector.load %arg5[%c0_5, %c0_6] : memref<128x64xbf16, #tpu.memory_space<vmem>>, vector<128x64xbf16>
    %cst_7 = arith.constant dense<0.000000e+00> : vector<192x64xf32>
    %10 = tpu.matmul %8, %9, %cst_7 {dimension_numbers = #tpu.dot_dimension_numbers<[1], [0], [0], [1], [0, 0, 1, 1], [], []>} : vector<192x128xbf16>, vector<128x64xbf16>, vector<192x64xf32> -> vector<192x64xf32>
    %c0_8 = arith.constant 0 : index
    %c0_9 = arith.constant 0 : index
    %11 = vector.load %arg6[%c0_8, %c0_9] : memref<1x64xf32, #tpu.memory_space<vmem>>, vector<1x64xf32>
    %12 = vector.broadcast %11 : vector<1x64xf32> to vector<192x64xf32>
    %13 = arith.addf %10, %12 : vector<192x64xf32>
    %cst_10 = arith.constant 0.000000e+00 : f32
    %14 = vector.broadcast %cst_10 : f32 to vector<192x64xf32>
    %15 = arith.maximumf %13, %14 : vector<192x64xf32>
    %16 = math.absf %13 : vector<192x64xf32>
    %cst_11 = arith.constant 0.000000e+00 : f32
    %17 = vector.broadcast %cst_11 : f32 to vector<192x64xf32>
    %18 = arith.subf %17, %16 : vector<192x64xf32>
    %19 = math.exp %18 : vector<192x64xf32>
    %20 = math.log1p %19 : vector<192x64xf32>
    %21 = arith.addf %15, %20 : vector<192x64xf32>
    %22 = tpu.iota {dimensions = array<i32: 1>} : vector<192x64xi32>
    %c32_i32 = arith.constant 32 : i32
    %23 = vector.broadcast %c32_i32 : i32 to vector<192x64xi32>
    %24 = arith.cmpi sge, %22, %23 : vector<192x64xi32>
    %25 = arith.select %24, %21, %13 : vector<192x64xi1>, vector<192x64xf32>
    %c0_12 = arith.constant 0 : index
    %c0_13 = arith.constant 0 : index
    %26 = vector.load %arg12[%c0_12, %c0_13] : memref<192x64xf32, #tpu.memory_space<vmem>>, vector<192x64xf32>
    tpu.vector_store %arg12[%c0_12, %c0_13], %25 {strides = array<i32>} : memref<192x64xf32, #tpu.memory_space<vmem>>, vector<192x64xf32>,
    %27 = vector.extract_strided_slice %13 {offsets = [0, 0], sizes = [192, 32], strides = [1, 1]} : vector<192x64xf32> to vector<192x32xf32>
    %28 = vector.extract_strided_slice %21 {offsets = [0, 32], sizes = [192, 32], strides = [1, 1]} : vector<192x64xf32> to vector<192x32xf32>
    %c0_14 = arith.constant 0 : index
    %c0_15 = arith.constant 0 : index
    %29 = vector.load %arg2[%c0_14, %c0_15] : memref<192x32xf32, #tpu.memory_space<vmem>>, vector<192x32xf32>
    %30 = arith.mulf %28, %29 : vector<192x32xf32>
    %31 = arith.addf %27, %30 : vector<192x32xf32>
    %32 = arith.truncf %31 : vector<192x32xf32> to vector<192x32xbf16>
    %c0_16 = arith.constant 0 : index
    %c0_17 = arith.constant 0 : index
    %33 = vector.load %arg7[%c0_16, %c0_17] : memref<32x128xbf16, #tpu.memory_space<vmem>>, vector<32x128xbf16>
    %cst_18 = arith.constant dense<0.000000e+00> : vector<192x128xf32>
    %34 = tpu.matmul %32, %33, %cst_18 {dimension_numbers = #tpu.dot_dimension_numbers<[1], [0], [0], [1], [0, 0, 1, 1], [], []>} : vector<192x32xbf16>, vector<32x128xbf16>, vector<192x128xf32> -> vector<192x128xf32>
    %c0_19 = arith.constant 0 : index
    %c0_20 = arith.constant 0 : index
    %35 = vector.load %arg8[%c0_19, %c0_20] : memref<1x128xf32, #tpu.memory_space<vmem>>, vector<1x128xf32>
    %36 = vector.broadcast %35 : vector<1x128xf32> to vector<192x128xf32>
    %37 = arith.addf %34, %36 : vector<192x128xf32>
    %38 = math.tanh %37 : vector<192x128xf32>
    %39 = arith.truncf %38 : vector<192x128xf32> to vector<192x128xbf16>
    %c0_21 = arith.constant 0 : index
    %c0_22 = arith.constant 0 : index
    %40 = vector.load %arg9[%c0_21, %c0_22] : memref<128x256xbf16, #tpu.memory_space<vmem>>, vector<128x256xbf16>
    %cst_23 = arith.constant dense<0.000000e+00> : vector<192x256xf32>
    %41 = tpu.matmul %39, %40, %cst_23 {dimension_numbers = #tpu.dot_dimension_numbers<[1], [0], [0], [1], [0, 0, 1, 1], [], []>} : vector<192x128xbf16>, vector<128x256xbf16>, vector<192x256xf32> -> vector<192x256xf32>
    %c0_24 = arith.constant 0 : index
    %c0_25 = arith.constant 0 : index
    %42 = vector.load %arg10[%c0_24, %c0_25] : memref<1x256xf32, #tpu.memory_space<vmem>>, vector<1x256xf32>
    %43 = vector.broadcast %42 : vector<1x256xf32> to vector<192x256xf32>
    %44 = arith.addf %41, %43 : vector<192x256xf32>
    %45 = math.tanh %44 : vector<192x256xf32>
    %46 = arith.truncf %45 : vector<192x256xf32> to vector<192x256xbf16>
    %c0_26 = arith.constant 0 : index
    %c0_27 = arith.constant 0 : index
    %47 = vector.load %arg11[%c0_26, %c0_27] : memref<192x256xbf16, #tpu.memory_space<vmem>>, vector<192x256xbf16>
    tpu.vector_store %arg11[%c0_26, %c0_27], %46 {strides = array<i32>} : memref<192x256xbf16, #tpu.memory_space<vmem>>, vector<192x256xbf16>,
    return
  }
  func.func @transform_0(%arg0: i32) -> (i32, i32) {
    %c0_i32 = arith.constant 0 : i32
    %c0_i32_0 = arith.constant 0 : i32
    return %arg0, %c0_i32 : i32, i32
  }
  func.func @transform_1(%arg0: i32) -> (i32, i32) {
    %c0_i32 = arith.constant 0 : i32
    %c0_i32_0 = arith.constant 0 : i32
    return %arg0, %c0_i32 : i32, i32
  }
  func.func @transform_2(%arg0: i32) -> (i32, i32) {
    %c0_i32 = arith.constant 0 : i32
    %c0_i32_0 = arith.constant 0 : i32
    %c0_i32_1 = arith.constant 0 : i32
    return %c0_i32, %c0_i32_0 : i32, i32
  }
  func.func @transform_3(%arg0: i32) -> (i32, i32) {
    %c0_i32 = arith.constant 0 : i32
    %c0_i32_0 = arith.constant 0 : i32
    %c0_i32_1 = arith.constant 0 : i32
    return %c0_i32, %c0_i32_0 : i32, i32
  }
  func.func @transform_4(%arg0: i32) -> (i32, i32) {
    %c0_i32 = arith.constant 0 : i32
    %c0_i32_0 = arith.constant 0 : i32
    %c0_i32_1 = arith.constant 0 : i32
    return %c0_i32, %c0_i32_0 : i32, i32
  }
  func.func @transform_5(%arg0: i32) -> (i32, i32) {
    %c0_i32 = arith.constant 0 : i32
    %c0_i32_0 = arith.constant 0 : i32
    %c0_i32_1 = arith.constant 0 : i32
    return %c0_i32, %c0_i32_0 : i32, i32
  }
  func.func @transform_6(%arg0: i32) -> (i32, i32) {
    %c0_i32 = arith.constant 0 : i32
    %c0_i32_0 = arith.constant 0 : i32
    %c0_i32_1 = arith.constant 0 : i32
    return %c0_i32, %c0_i32_0 : i32, i32
  }
  func.func @transform_7(%arg0: i32) -> (i32, i32) {
    %c0_i32 = arith.constant 0 : i32
    %c0_i32_0 = arith.constant 0 : i32
    %c0_i32_1 = arith.constant 0 : i32
    return %c0_i32, %c0_i32_0 : i32, i32
  }
  func.func @transform_8(%arg0: i32) -> (i32, i32) {
    %c0_i32 = arith.constant 0 : i32
    %c0_i32_0 = arith.constant 0 : i32
    %c0_i32_1 = arith.constant 0 : i32
    return %c0_i32, %c0_i32_0 : i32, i32
  }
  func.func @transform_9(%arg0: i32) -> (i32, i32) {
    %c0_i32 = arith.constant 0 : i32
    %c0_i32_0 = arith.constant 0 : i32
    %c0_i32_1 = arith.constant 0 : i32
    return %c0_i32, %c0_i32_0 : i32, i32
  }
  func.func @transform_10(%arg0: i32) -> (i32, i32) {
    %c0_i32 = arith.constant 0 : i32
    %c0_i32_0 = arith.constant 0 : i32
    return %arg0, %c0_i32 : i32, i32
  }
  func.func @transform_11(%arg0: i32) -> (i32, i32) {
    %c0_i32 = arith.constant 0 : i32
    %c0_i32_0 = arith.constant 0 : i32
    return %arg0, %c0_i32 : i32, i32
  }
}

</mosaic_0001>

<llo_original>
// kernel: tpu_custom_call.1
$region0: #{tpu_custom_call.1}
  #allocation0 [shape = 'u32[]', space=smem, size = 0x4, offset = 0x4, fixed_abs, tag = 'smem constant byte address 0x4 - core index']
  #allocation1 [shape = 'u32[72,128]{1,0:T(1,128)}', space=vmem, size = 0x9000, scoped, tag = 'internal scratch']
  %s0 = inlined_call_operand.hbm [shape: f32[384,256], index: 0, kind: input, shape index: {}]
  %s1 = inlined_call_operand.vmem [shape: f32[384,32], index: 1, kind: input, shape index: {}]
  %s2 = inlined_call_operand.vmem [shape: bf16[256,128], index: 2, kind: input, shape index: {}]
  %s3 = inlined_call_operand.vmem [shape: f32[1,128], index: 3, kind: input, shape index: {}]
  %s4 = inlined_call_operand.vmem [shape: bf16[128,64], index: 4, kind: input, shape index: {}]
  %s5 = inlined_call_operand.vmem [shape: f32[1,64], index: 5, kind: input, shape index: {}]
  %s6 = inlined_call_operand.vmem [shape: bf16[32,128], index: 6, kind: input, shape index: {}]
  %s7 = inlined_call_operand.vmem [shape: f32[1,128], index: 7, kind: input, shape index: {}]
  %s8 = inlined_call_operand.vmem [shape: bf16[128,256], index: 8, kind: input, shape index: {}]
  %s9 = inlined_call_operand.vmem [shape: f32[1,256], index: 9, kind: input, shape index: {}]
  %s10 = inlined_call_operand.hbm [shape: bf16[384,256], index: 10, kind: output, shape index: {0}]
  %s11 = inlined_call_operand.vmem [shape: f32[384,64], index: 11, kind: output, shape index: {1}]
  %12 = xla_tuple %s10, %s11
  %s13 = sld [smem:[#allocation0]]
  $region85: #{tpu_custom_call.1} parent=0
    _
  %s15 = ssub.s32 1, %s13
  %s16 = scalar_select 0, %s15, %s13
  $region1: #{tpu_custom_call.1} parent=0
    #allocation2 [shape = 'u8[393216]{0}', space=vmem, size = 0x60000, scoped, tag = 'input window, operand 0']
    #allocation3 [shape = 's32[2]{0}', space=sflag, size = 0x8, scoped, tag = 'scoped memory for tpu_custom_call.1']
    #allocation4 [shape = 's32[2]{0}', space=sflag, size = 0x8, scoped, tag = 'scoped memory for tpu_custom_call.1']
    #allocation5 [shape = 'u8[196608]{0}', space=vmem, size = 0x30000, scoped, tag = 'output window, operand 0']
    %17 = vsyncpa [#allocation3], 0
    %s18 = scalar_lea.sflag [#allocation3], 1
    %19 = vsyncpa %s18, 0
    %20 = vsyncpa [#allocation4], 0
    %s21 = scalar_lea.sflag [#allocation4], 1
    %22 = vsyncpa %s21, 0
    loop: start=0, step=1, limit=4
    $region2: #{tpu_custom_call.1} parent=1 // loop_pre_header
      _
    $region3: #{tpu_custom_call.1} parent=1 // loop_header
      %s24 = sphi 0, %s28
      %p25 = scmp.ge.s32.totalorder %s24, 4
      %s34 = sphi 0, %s36
      %s37 = sphi 0, %s34
      %s38 = sphi 0, %s37
      %s54 = sphi 0, %s38
      %s60 = sphi 0, %s62
      %s63 = sphi 0, %s60
      %s64 = sphi 0, %s63
      %s80 = sphi 0, %s64
      %s84 = sphi 0, %s84
      %s86 = sphi 0, %s84
      %s87 = sphi 0, %s86
      %s101 = sphi 0, %s87
      %s105 = sphi 0, %s105
      %s107 = sphi 0, %s105
      %s108 = sphi 0, %s107
      %s122 = sphi 0, %s108
      %s126 = sphi 0, %s126
      %s128 = sphi 0, %s126
      %s129 = sphi 0, %s128
      %s143 = sphi 0, %s129
      %s147 = sphi 0, %s147
      %s149 = sphi 0, %s147
      %s150 = sphi 0, %s149
      %s164 = sphi 0, %s150
      %s168 = sphi 0, %s168
      %s170 = sphi 0, %s168
      %s171 = sphi 0, %s170
      %s185 = sphi 0, %s171
      %s189 = sphi 0, %s189
      %s191 = sphi 0, %s189
      %s192 = sphi 0, %s191
      %s206 = sphi 0, %s192
      %s210 = sphi 0, %s210
      %s212 = sphi 0, %s210
      %s213 = sphi 0, %s212
      %s227 = sphi 0, %s213
      %s231 = sphi 0, %s231
      %s233 = sphi 0, %s231
      %s234 = sphi 0, %s233
      %s248 = sphi 0, %s234
      %s254 = sphi 0, %s256
      %s257 = sphi 0, %s254
      %s258 = sphi 0, %s257
      %s274 = sphi 0, %s258
      %s280 = sphi 0, %s282
      %s283 = sphi 0, %s280
      %s284 = sphi 0, %s283
      %s300 = sphi 0, %s284
    $region4: #{tpu_custom_call.1} parent=1 // loop_header_branch
      %27 = sbr.rel (%p25) target = $region8
    $region5: #{tpu_custom_call.1} parent=1 // loop_body
      %s29 = ssub.s32 %s24, 1
      %s30 = ssub.s32 %s24, 2
      %s31 = sadd.s32 %s24, 1
      %s32 = ssub.s32 %s24, %s31
      %p33 = scmp.eq.s32.totalorder %s32, 0
      %s35 = sadd.s32 %s34, 1
      %s36 = scalar_select %p33, %s34, %s35
      %p39 = pneg %p33
      %p40 = scmp.eq.s32.totalorder %s24, 1
      %p41 = por %p39, %p40
      %p42 = scmp.ne.s32.totalorder %s34, %s37
      %p43 = scmp.eq.s32.totalorder %s24, 0
      %p44 = por %p42, %p43
      %p45 = scmp.ne.s32.totalorder %s34, %s37
      %p46 = scmp.eq.s32.totalorder %s29, 1
      %p47 = por %p45, %p46
      %p48 = scmp.ne.s32.totalorder %s37, %s38
      %p49 = scmp.eq.s32.totalorder %s29, 0
      %p50 = por %p48, %p49
      %p51 = scmp.ne.s32.totalorder %s37, %s38
      %p52 = scmp.eq.s32.totalorder %s30, 1
      %p53 = por %p51, %p52
      %p55 = scmp.ne.s32.totalorder %s38, %s54
      %p56 = scmp.eq.s32.totalorder %s30, 0
      %p57 = por %p55, %p56
      %s58 = ssub.s32 %s24, %s31
      %p59 = scmp.eq.s32.totalorder %s58, 0
      %s61 = sadd.s32 %s60, 1
      %s62 = scalar_select %p59, %s60, %s61
      %p65 = pneg %p59
      %p66 = scmp.eq.s32.totalorder %s24, 1
      %p67 = por %p65, %p66
      %p68 = scmp.ne.s32.totalorder %s60, %s63
      %p69 = scmp.eq.s32.totalorder %s24, 0
      %p70 = por %p68, %p69
      %p71 = scmp.ne.s32.totalorder %s60, %s63
      %p72 = scmp.eq.s32.totalorder %s29, 1
      %p73 = por %p71, %p72
      %p74 = scmp.ne.s32.totalorder %s63, %s64
      %p75 = scmp.eq.s32.totalorder %s29, 0
      %p76 = por %p74, %p75
      %p77 = scmp.ne.s32.totalorder %s63, %s64
      %p78 = scmp.eq.s32.totalorder %s30, 1
      %p79 = por %p77, %p78
      %p81 = scmp.ne.s32.totalorder %s64, %s80
      %p82 = scmp.eq.s32.totalorder %s30, 0
      %p83 = por %p81, %p82
      %s85 = sadd.s32 %s84, 1
      %p88 = scmp.eq.s32.totalorder %s24, 1
      %p89 = scmp.ne.s32.totalorder %s84, %s86
      %p90 = scmp.eq.s32.totalorder %s24, 0
      %p91 = por %p89, %p90
      %p92 = scmp.ne.s32.totalorder %s84, %s86
      %p93 = scmp.eq.s32.totalorder %s29, 1
      %p94 = por %p92, %p93
      %p95 = scmp.ne.s32.totalorder %s86, %s87
      %p96 = scmp.eq.s32.totalorder %s29, 0
      %p97 = por %p95, %p96
      %p98 = scmp.ne.s32.totalorder %s86, %s87
      %p99 = scmp.eq.s32.totalorder %s30, 1
      %p100 = por %p98, %p99
      %p102 = scmp.ne.s32.totalorder %s87, %s101
      %p103 = scmp.eq.s32.totalorder %s30, 0
      %p104 = por %p102, %p103
      %s106 = sadd.s32 %s105, 1
      %p109 = scmp.eq.s32.totalorder %s24, 1
      %p110 = scmp.ne.s32.totalorder %s105, %s107
      %p111 = scmp.eq.s32.totalorder %s24, 0
      %p112 = por %p110, %p111
      %p113 = scmp.ne.s32.totalorder %s105, %s107
      %p114 = scmp.eq.s32.totalorder %s29, 1
      %p115 = por %p113, %p114
      %p116 = scmp.ne.s32.totalorder %s107, %s108
      %p117 = scmp.eq.s32.totalorder %s29, 0
      %p118 = por %p116, %p117
      %p119 = scmp.ne.s32.totalorder %s107, %s108
      %p120 = scmp.eq.s32.totalorder %s30, 1
      %p121 = por %p119, %p120
      %p123 = scmp.ne.s32.totalorder %s108, %s122
      %p124 = scmp.eq.s32.totalorder %s30, 0
      %p125 = por %p123, %p124
      %s127 = sadd.s32 %s126, 1
      %p130 = scmp.eq.s32.totalorder %s24, 1
      %p131 = scmp.ne.s32.totalorder %s126, %s128
      %p132 = scmp.eq.s32.totalorder %s24, 0
      %p133 = por %p131, %p132
      %p134 = scmp.ne.s32.totalorder %s126, %s128
      %p135 = scmp.eq.s32.totalorder %s29, 1
      %p136 = por %p134, %p135
      %p137 = scmp.ne.s32.totalorder %s128, %s129
      %p138 = scmp.eq.s32.totalorder %s29, 0
      %p139 = por %p137, %p138
      %p140 = scmp.ne.s32.totalorder %s128, %s129
      %p141 = scmp.eq.s32.totalorder %s30, 1
      %p142 = por %p140, %p141
      %p144 = scmp.ne.s32.totalorder %s129, %s143
      %p145 = scmp.eq.s32.totalorder %s30, 0
      %p146 = por %p144, %p145
      %s148 = sadd.s32 %s147, 1
      %p151 = scmp.eq.s32.totalorder %s24, 1
      %p152 = scmp.ne.s32.totalorder %s147, %s149
      %p153 = scmp.eq.s32.totalorder %s24, 0
      %p154 = por %p152, %p153
      %p155 = scmp.ne.s32.totalorder %s147, %s149
      %p156 = scmp.eq.s32.totalorder %s29, 1
      %p157 = por %p155, %p156
      %p158 = scmp.ne.s32.totalorder %s149, %s150
      %p159 = scmp.eq.s32.totalorder %s29, 0
      %p160 = por %p158, %p159
      %p161 = scmp.ne.s32.totalorder %s149, %s150
      %p162 = scmp.eq.s32.totalorder %s30, 1
      %p163 = por %p161, %p162
      %p165 = scmp.ne.s32.totalorder %s150, %s164
      %p166 = scmp.eq.s32.totalorder %s30, 0
      %p167 = por %p165, %p166
      %s169 = sadd.s32 %s168, 1
      %p172 = scmp.eq.s32.totalorder %s24, 1
      %p173 = scmp.ne.s32.totalorder %s168, %s170
      %p174 = scmp.eq.s32.totalorder %s24, 0
      %p175 = por %p173, %p174
      %p176 = scmp.ne.s32.totalorder %s168, %s170
      %p177 = scmp.eq.s32.totalorder %s29, 1
      %p178 = por %p176, %p177
      %p179 = scmp.ne.s32.totalorder %s170, %s171
      %p180 = scmp.eq.s32.totalorder %s29, 0
      %p181 = por %p179, %p180
      %p182 = scmp.ne.s32.totalorder %s170, %s171
      %p183 = scmp.eq.s32.totalorder %s30, 1
      %p184 = por %p182, %p183
      %p186 = scmp.ne.s32.totalorder %s171, %s185
      %p187 = scmp.eq.s32.totalorder %s30, 0
      %p188 = por %p186, %p187
      %s190 = sadd.s32 %s189, 1
      %p193 = scmp.eq.s32.totalorder %s24, 1
      %p194 = scmp.ne.s32.totalorder %s189, %s191
      %p195 = scmp.eq.s32.totalorder %s24, 0
      %p196 = por %p194, %p195
      %p197 = scmp.ne.s32.totalorder %s189, %s191
      %p198 = scmp.eq.s32.totalorder %s29, 1
      %p199 = por %p197, %p198
      %p200 = scmp.ne.s32.totalorder %s191, %s192
      %p201 = scmp.eq.s32.totalorder %s29, 0
      %p202 = por %p200, %p201
      %p203 = scmp.ne.s32.totalorder %s191, %s192
      %p204 = scmp.eq.s32.totalorder %s30, 1
      %p205 = por %p203, %p204
      %p207 = scmp.ne.s32.totalorder %s192, %s206
      %p208 = scmp.eq.s32.totalorder %s30, 0
      %p209 = por %p207, %p208
      %s211 = sadd.s32 %s210, 1
      %p214 = scmp.eq.s32.totalorder %s24, 1
      %p215 = scmp.ne.s32.totalorder %s210, %s212
      %p216 = scmp.eq.s32.totalorder %s24, 0
      %p217 = por %p215, %p216
      %p218 = scmp.ne.s32.totalorder %s210, %s212
      %p219 = scmp.eq.s32.totalorder %s29, 1
      %p220 = por %p218, %p219
      %p221 = scmp.ne.s32.totalorder %s212, %s213
      %p222 = scmp.eq.s32.totalorder %s29, 0
      %p223 = por %p221, %p222
      %p224 = scmp.ne.s32.totalorder %s212, %s213
      %p225 = scmp.eq.s32.totalorder %s30, 1
      %p226 = por %p224, %p225
      %p228 = scmp.ne.s32.totalorder %s213, %s227
      %p229 = scmp.eq.s32.totalorder %s30, 0
      %p230 = por %p228, %p229
      %s232 = sadd.s32 %s231, 1
      %p235 = scmp.eq.s32.totalorder %s24, 1
      %p236 = scmp.ne.s32.totalorder %s231, %s233
      %p237 = scmp.eq.s32.totalorder %s24, 0
      %p238 = por %p236, %p237
      %p239 = scmp.ne.s32.totalorder %s231, %s233
      %p240 = scmp.eq.s32.totalorder %s29, 1
      %p241 = por %p239, %p240
      %p242 = scmp.ne.s32.totalorder %s233, %s234
      %p243 = scmp.eq.s32.totalorder %s29, 0
      %p244 = por %p242, %p243
      %p245 = scmp.ne.s32.totalorder %s233, %s234
      %p246 = scmp.eq.s32.totalorder %s30, 1
      %p247 = por %p245, %p246
      %p249 = scmp.ne.s32.totalorder %s234, %s248
      %p250 = scmp.eq.s32.totalorder %s30, 0
      %p251 = por %p249, %p250
      %s252 = ssub.s32 %s24, %s31
      %p253 = scmp.eq.s32.totalorder %s252, 0
      %s255 = sadd.s32 %s254, 1
      %s256 = scalar_select %p253, %s254, %s255
      %p259 = pneg %p253
      %p260 = scmp.eq.s32.totalorder %s24, 1
      %p261 = por %p259, %p260
      %p262 = scmp.ne.s32.totalorder %s254, %s257
      %p263 = scmp.eq.s32.totalorder %s24, 0
      %p264 = por %p262, %p263
      %p265 = scmp.ne.s32.totalorder %s254, %s257
      %p266 = scmp.eq.s32.totalorder %s29, 1
      %p267 = por %p265, %p266
      %p268 = scmp.ne.s32.totalorder %s257, %s258
      %p269 = scmp.eq.s32.totalorder %s29, 0
      %p270 = por %p268, %p269
      %p271 = scmp.ne.s32.totalorder %s257, %s258
      %p272 = scmp.eq.s32.totalorder %s30, 1
      %p273 = por %p271, %p272
      %p275 = scmp.ne.s32.totalorder %s258, %s274
      %p276 = scmp.eq.s32.totalorder %s30, 0
      %p277 = por %p275, %p276
      %s278 = ssub.s32 %s24, %s31
      %p279 = scmp.eq.s32.totalorder %s278, 0
      %s281 = sadd.s32 %s280, 1
      %s282 = scalar_select %p279, %s280, %s281
      %p285 = pneg %p279
      %p286 = scmp.eq.s32.totalorder %s24, 1
      %p287 = por %p285, %p286
      %p288 = scmp.ne.s32.totalorder %s280, %s283
      %p289 = scmp.eq.s32.totalorder %s24, 0
      %p290 = por %p288, %p289
      %p291 = scmp.ne.s32.totalorder %s280, %s283
      %p292 = scmp.eq.s32.totalorder %s29, 1
      %p293 = por %p291, %p292
      %p294 = scmp.ne.s32.totalorder %s283, %s284
      %p295 = scmp.eq.s32.totalorder %s29, 0
      %p296 = por %p294, %p295
      %p297 = scmp.ne.s32.totalorder %s283, %s284
      %p298 = scmp.eq.s32.totalorder %s30, 1
      %p299 = por %p297, %p298
      %p301 = scmp.ne.s32.totalorder %s284, %s300
      %p302 = scmp.eq.s32.totalorder %s30, 0
      %p303 = por %p301, %p302
      %p304 = scmp.le.s32.totalorder 1, %s24
      %p305 = scmp.lt.s32.totalorder %s24, 3
      %p306 = pnand %p304, %p305
      %p307 = pneg %p306
      // Predicated region
      $region9: #{tpu_custom_call.1} parent=5 // pred_check
        _
      $region10: #{tpu_custom_call.1} parent=5 // pred_check_branch
        %309 = sbr.rel (%p306) target = $region12
      $region11: #{tpu_custom_call.1} parent=5 // pred_region
        %s310 = ssub.s32 %s24, 1
        // Predicated region
        $region13: #{tpu_custom_call.1} parent=11 // pred_check
          %p311 = pneg %p97
        $region14: #{tpu_custom_call.1} parent=11 // pred_check_branch
          %313 = sbr.rel (%p311) target = $region16
        $region15: #{tpu_custom_call.1} parent=11 // pred_region
          _
        $region16: #{tpu_custom_call.1} parent=11 // pred_fallthru
          _
        // Predicated region
        $region17: #{tpu_custom_call.1} parent=11 // pred_check
          %p314 = pneg %p118
        $region18: #{tpu_custom_call.1} parent=11 // pred_check_branch
          %316 = sbr.rel (%p314) target = $region20
        $region19: #{tpu_custom_call.1} parent=11 // pred_region
          _
        $region20: #{tpu_custom_call.1} parent=11 // pred_fallthru
          _
        // Predicated region
        $region21: #{tpu_custom_call.1} parent=11 // pred_check
          %p317 = pneg %p139
        $region22: #{tpu_custom_call.1} parent=11 // pred_check_branch
          %319 = sbr.rel (%p317) target = $region24
        $region23: #{tpu_custom_call.1} parent=11 // pred_region
          _
        $region24: #{tpu_custom_call.1} parent=11 // pred_fallthru
          _
        // Predicated region
        $region25: #{tpu_custom_call.1} parent=11 // pred_check
          %p320 = pneg %p160
        $region26: #{tpu_custom_call.1} parent=11 // pred_check_branch
          %322 = sbr.rel (%p320) target = $region28
        $region27: #{tpu_custom_call.1} parent=11 // pred_region
          _
        $region28: #{tpu_custom_call.1} parent=11 // pred_fallthru
          _
        // Predicated region
        $region29: #{tpu_custom_call.1} parent=11 // pred_check
          %p323 = pneg %p181
        $region30: #{tpu_custom_call.1} parent=11 // pred_check_branch
          %325 = sbr.rel (%p323) target = $region32
        $region31: #{tpu_custom_call.1} parent=11 // pred_region
          _
        $region32: #{tpu_custom_call.1} parent=11 // pred_fallthru
          _
        // Predicated region
        $region33: #{tpu_custom_call.1} parent=11 // pred_check
          %p326 = pneg %p202
        $region34: #{tpu_custom_call.1} parent=11 // pred_check_branch
          %328 = sbr.rel (%p326) target = $region36
        $region35: #{tpu_custom_call.1} parent=11 // pred_region
          _
        $region36: #{tpu_custom_call.1} parent=11 // pred_fallthru
          _
        // Predicated region
        $region37: #{tpu_custom_call.1} parent=11 // pred_check
          %p329 = pneg %p223
        $region38: #{tpu_custom_call.1} parent=11 // pred_check_branch
          %331 = sbr.rel (%p329) target = $region40
        $region39: #{tpu_custom_call.1} parent=11 // pred_region
          _
        $region40: #{tpu_custom_call.1} parent=11 // pred_fallthru
          _
        // Predicated region
        $region41: #{tpu_custom_call.1} parent=11 // pred_check
          %p332 = pneg %p244
        $region42: #{tpu_custom_call.1} parent=11 // pred_check_branch
          %334 = sbr.rel (%p332) target = $region44
        $region43: #{tpu_custom_call.1} parent=11 // pred_region
          _
        $region44: #{tpu_custom_call.1} parent=11 // pred_fallthru
          _
      $region12: #{tpu_custom_call.1} parent=5 // pred_fallthru
        _
      %p335 = scmp.lt.s32.totalorder %s24, 2
      // Predicated region
      $region45: #{tpu_custom_call.1} parent=5 // pred_check
        %p336 = pneg %p335
      $region46: #{tpu_custom_call.1} parent=5 // pred_check_branch
        %338 = sbr.rel (%p336) target = $region48
      $region47: #{tpu_custom_call.1} parent=5 // pred_region
        // Predicated region
        $region49: #{tpu_custom_call.1} parent=47 // pred_check
          %p339 = pneg %p44
        $region50: #{tpu_custom_call.1} parent=47 // pred_check_branch
          %341 = sbr.rel (%p339) target = $region52
        $region51: #{tpu_custom_call.1} parent=47 // pred_region
          %s342 = sand.u32 %s34, 1
          %s343 = scalar_lea.sflag [#allocation3], %s342
          %s344 = sand.u32 %s34, 1
          %s345 = smul.addr %s344, 384
          %s346 = scalar_lea.vmem [#allocation2], %s345
          %s347 = smul.u32 24, %s24
          %349 = vsyncadd %s343, 0
          %s350 = smul.addr %s347, 2
          %s351 = smul.addr %s350, 8
          %s352 = scalar_lea.hbm %s0, %s351
          %s353 = sshll.u32 %s352, 4
          %s354 = int_to_ptr.hbm [resolvable:$true] %s353
          %s355 = sshll.u32 %s346, 4
          %s356 = int_to_ptr.vmem [resolvable:$true] %s355
          %361 = dma.hbm_to_vmem [thread:$0]  %s354, 6144, %s356, %s343, 256, 256, 16
        $region52: #{tpu_custom_call.1} parent=47 // pred_fallthru
          _
        // Predicated region
        $region53: #{tpu_custom_call.1} parent=47 // pred_check
          %p362 = pneg %p70
        $region54: #{tpu_custom_call.1} parent=47 // pred_check_branch
          %364 = sbr.rel (%p362) target = $region56
        $region55: #{tpu_custom_call.1} parent=47 // pred_region
          %s365 = smul.u32 24, %s24
          %p366 = scmp.lt.s32.totalorder %s365, 47
          %s367 = scalar_select %p366, %s365, 47
          %s368 = smul.addr %s367, 8
          %s369 = scalar_lea.vmem %s1, %s368
          %s370 = smul.u32 24, %s24
        $region56: #{tpu_custom_call.1} parent=47 // pred_fallthru
          _
      $region48: #{tpu_custom_call.1} parent=5 // pred_fallthru
        _
      %p371 = scmp.le.s32.totalorder 1, %s24
      %p372 = scmp.lt.s32.totalorder %s24, 3
      %p373 = pnand %p371, %p372
      %p374 = pneg %p373
      // Predicated region
      $region57: #{tpu_custom_call.1} parent=5 // pred_check
        _
      $region58: #{tpu_custom_call.1} parent=5 // pred_check_branch
        %376 = sbr.rel (%p373) target = $region60
      $region59: #{tpu_custom_call.1} parent=5 // pred_region
        %s377 = ssub.s32 %s24, 1
        %s378 = sand.u32 %s37, 1
        %s379 = scalar_lea.sflag [#allocation3], %s378
        %s380 = sand.u32 %s37, 1
        %s381 = smul.addr %s380, 384
        %s382 = scalar_lea.vmem [#allocation2], %s381
        // Predicated region
        $region61: #{tpu_custom_call.1} parent=59 // pred_check
          %p383 = pneg %p50
        $region62: #{tpu_custom_call.1} parent=59 // pred_check_branch
          %385 = sbr.rel (%p383) target = $region64
        $region63: #{tpu_custom_call.1} parent=59 // pred_region
          %387 = dma.done %s379, 6144
        $region64: #{tpu_custom_call.1} parent=59 // pred_fallthru
          _
        %s388 = sand.u32 %s37, 1
        %s389 = scalar_lea.sflag [#allocation3], %s388
        %s390 = sand.u32 %s37, 1
        %s391 = smul.addr %s390, 384
        %s392 = scalar_lea.vmem [#allocation2], %s391
        %p393 = pneg %p50
        %p394 = pneg %p47
        %s395 = smul.u32 24, %s29
        %p396 = scmp.lt.s32.totalorder %s395, 47
        %s397 = scalar_select %p396, %s395, 47
        %s398 = smul.addr %s397, 8
        %s399 = scalar_lea.vmem %s1, %s398
        %p400 = pneg %p76
        %p401 = pneg %p73
        %p402 = pneg %p97
        %p403 = pneg %p94
        %p404 = pneg %p118
        %p405 = pneg %p115
        %p406 = pneg %p139
        %p407 = pneg %p136
        %p408 = pneg %p160
        %p409 = pneg %p157
        %p410 = pneg %p181
        %p411 = pneg %p178
        %p412 = pneg %p202
        %p413 = pneg %p199
        %p414 = pneg %p223
        %p415 = pneg %p220
        %p416 = pneg %p244
        %p417 = pneg %p241
        %p418 = pneg %p270
        %p419 = pneg %p267
        %s420 = sand.u32 %s257, 1
        %s421 = scalar_lea.sflag [#allocation4], %s420
        %s422 = sand.u32 %s257, 1
        %s423 = smul.addr %s422, 192
        %s424 = scalar_lea.vmem [#allocation5], %s423
        %p425 = pneg %p296
        %p426 = pneg %p293
        %s427 = smul.u32 24, %s29
        %p428 = scmp.lt.s32.totalorder %s427, 47
        %s429 = scalar_select %p428, %s427, 47
        %s430 = smul.addr %s429, 8
        %s431 = scalar_lea.vmem %s11, %s430
        %s432 = smul.u32 24, %s29
        %s433 = smul.u32 24, %s29
        %p434 = scmp.lt.s32.totalorder %s433, 47
        %s435 = scalar_select %p434, %s433, 47
        %s436 = smul.addr %s435, 8
        %s437 = scalar_lea.vmem %s1, %s436
        %s438 = smul.u32 24, %s29
        %s439 = smul.u32 24, %s29
        %s440 = smul.u32 24, %s29
        %p441 = scmp.lt.s32.totalorder %s440, 47
        %s442 = scalar_select %p441, %s440, 47
        %s443 = smul.addr %s442, 8
        %s444 = scalar_lea.vmem %s11, %s443
        %s445 = smul.u32 24, %s29
        %v447 = vld [vmem:[%s382] sm:$0xff]
        %v448 = vld [vmem:[%s382 + $0x8] sm:$0xff]
        %v449 = vld [vmem:[%s382 + $0x10] sm:$0xff]
        %v450 = vld [vmem:[%s382 + $0x18] sm:$0xff]
        %v451 = vld [vmem:[%s382 + $0x20] sm:$0xff]
        %v452 = vld [vmem:[%s382 + $0x28] sm:$0xff]
        %v453 = vld [vmem:[%s382 + $0x30] sm:$0xff]
        %v454 = vld [vmem:[%s382 + $0x38] sm:$0xff]
        %v455 = vld [vmem:[%s382 + $0x40] sm:$0xff]
        %v456 = vld [vmem:[%s382 + $0x48] sm:$0xff]
        %v457 = vld [vmem:[%s382 + $0x50] sm:$0xff]
        %v458 = vld [vmem:[%s382 + $0x58] sm:$0xff]
        %v459 = vld [vmem:[%s382 + $0x60] sm:$0xff]
        %v460 = vld [vmem:[%s382 + $0x68] sm:$0xff]
        %v461 = vld [vmem:[%s382 + $0x70] sm:$0xff]
        %v462 = vld [vmem:[%s382 + $0x78] sm:$0xff]
        %v463 = vld [vmem:[%s382 + $0x80] sm:$0xff]
        %v464 = vld [vmem:[%s382 + $0x88] sm:$0xff]
        %v465 = vld [vmem:[%s382 + $0x90] sm:$0xff]
        %v466 = vld [vmem:[%s382 + $0x98] sm:$0xff]
        %v467 = vld [vmem:[%s382 + $0xa0] sm:$0xff]
        %v468 = vld [vmem:[%s382 + $0xa8] sm:$0xff]
        %v469 = vld [vmem:[%s382 + $0xb0] sm:$0xff]
        %v470 = vld [vmem:[%s382 + $0xb8] sm:$0xff]
        %v471 = vld [vmem:[%s382 + $0xc0] sm:$0xff]
        %v472 = vld [vmem:[%s382 + $0xc8] sm:$0xff]
        %v473 = vld [vmem:[%s382 + $0xd0] sm:$0xff]
        %v474 = vld [vmem:[%s382 + $0xd8] sm:$0xff]
        %v475 = vld [vmem:[%s382 + $0xe0] sm:$0xff]
        %v476 = vld [vmem:[%s382 + $0xe8] sm:$0xff]
        %v477 = vld [vmem:[%s382 + $0xf0] sm:$0xff]
        %v478 = vld [vmem:[%s382 + $0xf8] sm:$0xff]
        %v479 = vld [vmem:[%s382 + $0x100] sm:$0xff]
        %v480 = vld [vmem:[%s382 + $0x108] sm:$0xff]
        %v481 = vld [vmem:[%s382 + $0x110] sm:$0xff]
        %v482 = vld [vmem:[%s382 + $0x118] sm:$0xff]
        %v483 = vld [vmem:[%s382 + $0x120] sm:$0xff]
        %v484 = vld [vmem:[%s382 + $0x128] sm:$0xff]
        %v485 = vld [vmem:[%s382 + $0x130] sm:$0xff]
        %v486 = vld [vmem:[%s382 + $0x138] sm:$0xff]
        %v487 = vld [vmem:[%s382 + $0x140] sm:$0xff]
        %v488 = vld [vmem:[%s382 + $0x148] sm:$0xff]
        %v489 = vld [vmem:[%s382 + $0x150] sm:$0xff]
        %v490 = vld [vmem:[%s382 + $0x158] sm:$0xff]
        %v491 = vld [vmem:[%s382 + $0x160] sm:$0xff]
        %v492 = vld [vmem:[%s382 + $0x168] sm:$0xff]
        %v493 = vld [vmem:[%s382 + $0x170] sm:$0xff]
        %v494 = vld [vmem:[%s382 + $0x178] sm:$0xff]
        %v495 = vpack.c.bf16 %v449, %v447
        %v496 = vpack.c.bf16 %v450, %v448
        %v497 = vpack.c.bf16 %v453, %v451
        %v498 = vpack.c.bf16 %v454, %v452
        %v499 = vpack.c.bf16 %v457, %v455
        %v500 = vpack.c.bf16 %v458, %v456
        %v501 = vpack.c.bf16 %v461, %v459
        %v502 = vpack.c.bf16 %v462, %v460
        %v503 = vpack.c.bf16 %v465, %v463
        %v504 = vpack.c.bf16 %v466, %v464
        %v505 = vpack.c.bf16 %v469, %v467
        %v506 = vpack.c.bf16 %v470, %v468
        %v507 = vpack.c.bf16 %v473, %v471
        %v508 = vpack.c.bf16 %v474, %v472
        %v509 = vpack.c.bf16 %v477, %v475
        %v510 = vpack.c.bf16 %v478, %v476
        %v511 = vpack.c.bf16 %v481, %v479
        %v512 = vpack.c.bf16 %v482, %v480
        %v513 = vpack.c.bf16 %v485, %v483
        %v514 = vpack.c.bf16 %v486, %v484
        %v515 = vpack.c.bf16 %v489, %v487
        %v516 = vpack.c.bf16 %v490, %v488
        %v517 = vpack.c.bf16 %v493, %v491
        %v518 = vpack.c.bf16 %v494, %v492
        %v519 = vld [vmem:[%s2] sm:$0xf]
        %v520 = vld [vmem:[%s2 + $0x4] sm:$0xf]
        %v521 = vld [vmem:[%s2 + $0x8] sm:$0xf]
        %v522 = vld [vmem:[%s2 + $0xc] sm:$0xf]
        %v523 = vld [vmem:[%s2 + $0x10] sm:$0xf]
        %v524 = vld [vmem:[%s2 + $0x14] sm:$0xf]
        %v525 = vld [vmem:[%s2 + $0x18] sm:$0xf]
        %v526 = vld [vmem:[%s2 + $0x1c] sm:$0xf]
        %v527 = vld [vmem:[%s2 + $0x20] sm:$0xf]
        %v528 = vld [vmem:[%s2 + $0x24] sm:$0xf]
        %v529 = vld [vmem:[%s2 + $0x28] sm:$0xf]
        %v530 = vld [vmem:[%s2 + $0x2c] sm:$0xf]
        %v531 = vld [vmem:[%s2 + $0x30] sm:$0xf]
        %v532 = vld [vmem:[%s2 + $0x34] sm:$0xf]
        %v533 = vld [vmem:[%s2 + $0x38] sm:$0xf]
        %v534 = vld [vmem:[%s2 + $0x3c] sm:$0xf]
        %v535 = vld [vmem:[%s2 + $0x40] sm:$0xf]
        %v536 = vld [vmem:[%s2 + $0x44] sm:$0xf]
        %v537 = vld [vmem:[%s2 + $0x48] sm:$0xf]
        %v538 = vld [vmem:[%s2 + $0x4c] sm:$0xf]
        %v539 = vld [vmem:[%s2 + $0x50] sm:$0xf]
        %v540 = vld [vmem:[%s2 + $0x54] sm:$0xf]
        %v541 = vld [vmem:[%s2 + $0x58] sm:$0xf]
        %v542 = vld [vmem:[%s2 + $0x5c] sm:$0xf]
        %v543 = vld [vmem:[%s2 + $0x60] sm:$0xf]
        %v544 = vld [vmem:[%s2 + $0x64] sm:$0xf]
        %v545 = vld [vmem:[%s2 + $0x68] sm:$0xf]
        %v546 = vld [vmem:[%s2 + $0x6c] sm:$0xf]
        %v547 = vld [vmem:[%s2 + $0x70] sm:$0xf]
        %v548 = vld [vmem:[%s2 + $0x74] sm:$0xf]
        %v549 = vld [vmem:[%s2 + $0x78] sm:$0xf]
        %v550 = vld [vmem:[%s2 + $0x7c] sm:$0xf]
        %v551 = vld [vmem:[%s3] sm:$0x1]
        %v553 = vperm.slane %v551, 0
        %v587 = vunpack.c.l.b16 %v519
        %v588 = vunpack.c.l.b16 %v520
        %v589 = vunpack.c.l.b16 %v521
        %v590 = vunpack.c.l.b16 %v522
        %v591 = vunpack.c.l.b16 %v523
        %v592 = vunpack.c.l.b16 %v524
        %v593 = vunpack.c.l.b16 %v525
        %v594 = vunpack.c.l.b16 %v526
        %v595 = vunpack.c.l.b16 %v527
        %v596 = vunpack.c.l.b16 %v528
        %v597 = vunpack.c.l.b16 %v529
        %v598 = vunpack.c.l.b16 %v530
        %v599 = vunpack.c.l.b16 %v531
        %v600 = vunpack.c.l.b16 %v532
        %v601 = vunpack.c.l.b16 %v533
        %v602 = vunpack.c.l.b16 %v534
        %v603 = vunpack.c.l.b16 %v535
        %v604 = vunpack.c.l.b16 %v536
        %v605 = vunpack.c.l.b16 %v537
        %v606 = vunpack.c.l.b16 %v538
        %v607 = vunpack.c.l.b16 %v539
        %v608 = vunpack.c.l.b16 %v540
        %v609 = vunpack.c.l.b16 %v541
        %v610 = vunpack.c.l.b16 %v542
        %v611 = vunpack.c.l.b16 %v543
        %v612 = vunpack.c.l.b16 %v544
        %v613 = vunpack.c.l.b16 %v545
        %v614 = vunpack.c.l.b16 %v546
        %v615 = vunpack.c.l.b16 %v547
        %v616 = vunpack.c.l.b16 %v548
        %v617 = vunpack.c.l.b16 %v549
        %v618 = vunpack.c.l.b16 %v550
        %v619 = vpack.c.b16 %v588, %v587
        %v620 = vpack.c.b16 %v590, %v589
        %v621 = vpack.c.b16 %v592, %v591
        %v622 = vpack.c.b16 %v594, %v593
        %v623 = vpack.c.b16 %v596, %v595
        %v624 = vpack.c.b16 %v598, %v597
        %v625 = vpack.c.b16 %v600, %v599
        %v626 = vpack.c.b16 %v602, %v601
        %v627 = vpack.c.b16 %v604, %v603
        %v628 = vpack.c.b16 %v606, %v605
        %v629 = vpack.c.b16 %v608, %v607
        %v630 = vpack.c.b16 %v610, %v609
        %v631 = vpack.c.b16 %v612, %v611
        %v632 = vpack.c.b16 %v614, %v613
        %v633 = vpack.c.b16 %v616, %v615
        %v634 = vpack.c.b16 %v618, %v617
        %651 = vmatpush.bf16.msra.mxu0 %v626
        %652 = vmatpush.bf16.msra.mxu0 %v625
        %653 = vmatpush.bf16.msra.mxu0 %v624
        %654 = vmatpush.bf16.msra.mxu0 %v623
        %655 = vmatpush.bf16.msra.mxu0 %v622
        %656 = vmatpush.bf16.msra.mxu0 %v621
        %657 = vmatpush.bf16.msra.mxu0 %v620
        %658 = vmatpush.bf16.msra.mxu0 %v619
        %659 = vmatmul.bf16.gmra.mxu0 %v495
        %v660 = vpop.f32.mrf.mxu0
        %v661 = vadd.f32 %v553, %v660
        %v662 = vpop.f32.mrf.mxu0
        %v663 = vadd.f32 %v553, %v662
        %664 = vmatmul.bf16.gmra.mxu0 %v497
        %v665 = vpop.f32.mrf.mxu0
        %v666 = vadd.f32 %v553, %v665
        %v667 = vpop.f32.mrf.mxu0
        %v668 = vadd.f32 %v553, %v667
        %669 = vmatmul.bf16.gmra.mxu0 %v499
        %v670 = vpop.f32.mrf.mxu0
        %v671 = vadd.f32 %v553, %v670
        %v672 = vpop.f32.mrf.mxu0
        %v673 = vadd.f32 %v553, %v672
        %674 = vmatmul.bf16.gmra.mxu0 %v501
        %v675 = vpop.f32.mrf.mxu0
        %v676 = vadd.f32 %v553, %v675
        %v677 = vpop.f32.mrf.mxu0
        %v678 = vadd.f32 %v553, %v677
        %679 = vmatmul.bf16.gmra.mxu0 %v503
        %v680 = vpop.f32.mrf.mxu0
        %v681 = vadd.f32 %v553, %v680
        %v682 = vpop.f32.mrf.mxu0
        %v683 = vadd.f32 %v553, %v682
        %684 = vmatmul.bf16.gmra.mxu0 %v505
        %v685 = vpop.f32.mrf.mxu0
        %v686 = vadd.f32 %v553, %v685
        %v687 = vpop.f32.mrf.mxu0
        %v688 = vadd.f32 %v553, %v687
        %689 = vmatmul.bf16.gmra.mxu0 %v507
        %v690 = vpop.f32.mrf.mxu0
        %v691 = vadd.f32 %v553, %v690
        %v692 = vpop.f32.mrf.mxu0
        %v693 = vadd.f32 %v553, %v692
        %694 = vmatmul.bf16.gmra.mxu0 %v509
        %v695 = vpop.f32.mrf.mxu0
        %v696 = vadd.f32 %v553, %v695
        %v697 = vpop.f32.mrf.mxu0
        %v698 = vadd.f32 %v553, %v697
        %699 = vmatmul.bf16.gmra.mxu0 %v511
        %v700 = vpop.f32.mrf.mxu0
        %v701 = vadd.f32 %v553, %v700
        %v702 = vpop.f32.mrf.mxu0
        %v703 = vadd.f32 %v553, %v702
        %704 = vmatmul.bf16.gmra.mxu0 %v513
        %v705 = vpop.f32.mrf.mxu0
        %v706 = vadd.f32 %v553, %v705
        %v707 = vpop.f32.mrf.mxu0
        %v708 = vadd.f32 %v553, %v707
        %709 = vmatmul.bf16.gmra.mxu0 %v515
        %v710 = vpop.f32.mrf.mxu0
        %v711 = vadd.f32 %v553, %v710
        %v712 = vpop.f32.mrf.mxu0
        %v713 = vadd.f32 %v553, %v712
        %714 = vmatmul.bf16.gmra.mxu0 %v517
        %v715 = vpop.f32.mrf.mxu0
        %v716 = vadd.f32 %v553, %v715
        %v717 = vpop.f32.mrf.mxu0
        %v718 = vadd.f32 %v553, %v717
        %719 = vdwg.mxu0
        %720 = vmatpush.bf16.msra.mxu0 %v634
        %721 = vmatpush.bf16.msra.mxu0 %v633
        %722 = vmatpush.bf16.msra.mxu0 %v632
        %723 = vmatpush.bf16.msra.mxu0 %v631
        %724 = vmatpush.bf16.msra.mxu0 %v630
        %725 = vmatpush.bf16.msra.mxu0 %v629
        %726 = vmatpush.bf16.msra.mxu0 %v628
        %727 = vmatpush.bf16.msra.mxu0 %v627
        %728 = vmatmul.bf16.gmra.mxu0 %v496
        %v729 = vpop.f32.mrf.mxu0
        %v730 = vadd.f32 %v661, %v729
        %v731 = vpop.f32.mrf.mxu0
        %v732 = vadd.f32 %v663, %v731
        %733 = vmatmul.bf16.gmra.mxu0 %v498
        %v734 = vpop.f32.mrf.mxu0
        %v735 = vadd.f32 %v666, %v734
        %v736 = vpop.f32.mrf.mxu0
        %v737 = vadd.f32 %v668, %v736
        %738 = vmatmul.bf16.gmra.mxu0 %v500
        %v739 = vpop.f32.mrf.mxu0
        %v740 = vadd.f32 %v671, %v739
        %v741 = vpop.f32.mrf.mxu0
        %v742 = vadd.f32 %v673, %v741
        %743 = vmatmul.bf16.gmra.mxu0 %v502
        %v744 = vpop.f32.mrf.mxu0
        %v745 = vadd.f32 %v676, %v744
        %v746 = vpop.f32.mrf.mxu0
        %v747 = vadd.f32 %v678, %v746
        %748 = vmatmul.bf16.gmra.mxu0 %v504
        %v749 = vpop.f32.mrf.mxu0
        %v750 = vadd.f32 %v681, %v749
        %v751 = vpop.f32.mrf.mxu0
        %v752 = vadd.f32 %v683, %v751
        %753 = vmatmul.bf16.gmra.mxu0 %v506
        %v754 = vpop.f32.mrf.mxu0
        %v755 = vadd.f32 %v686, %v754
        %v756 = vpop.f32.mrf.mxu0
        %v757 = vadd.f32 %v688, %v756
        %758 = vmatmul.bf16.gmra.mxu0 %v508
        %v759 = vpop.f32.mrf.mxu0
        %v760 = vadd.f32 %v691, %v759
        %v761 = vpop.f32.mrf.mxu0
        %v762 = vadd.f32 %v693, %v761
        %763 = vmatmul.bf16.gmra.mxu0 %v510
        %v764 = vpop.f32.mrf.mxu0
        %v765 = vadd.f32 %v696, %v764
        %v766 = vpop.f32.mrf.mxu0
        %v767 = vadd.f32 %v698, %v766
        %768 = vmatmul.bf16.gmra.mxu0 %v512
        %v769 = vpop.f32.mrf.mxu0
        %v770 = vadd.f32 %v701, %v769
        %v771 = vpop.f32.mrf.mxu0
        %v772 = vadd.f32 %v703, %v771
        %773 = vmatmul.bf16.gmra.mxu0 %v514
        %v774 = vpop.f32.mrf.mxu0
        %v775 = vadd.f32 %v706, %v774
        %v776 = vpop.f32.mrf.mxu0
        %v777 = vadd.f32 %v708, %v776
        %778 = vmatmul.bf16.gmra.mxu0 %v516
        %v779 = vpop.f32.mrf.mxu0
        %v780 = vadd.f32 %v711, %v779
        %v781 = vpop.f32.mrf.mxu0
        %v782 = vadd.f32 %v713, %v781
        %783 = vmatmul.bf16.gmra.mxu0 %v518
        %v784 = vpop.f32.mrf.mxu0
        %v785 = vadd.f32 %v716, %v784
        %v786 = vpop.f32.mrf.mxu0
        %v787 = vadd.f32 %v718, %v786
        %788 = vdwg.mxu0
        %v789 = vtanh.pop %v730
        %v790 = vtanh.pop %v732
        %v791 = vtanh.pop %v735
        %v792 = vtanh.pop %v737
        %v793 = vtanh.pop %v740
        %v794 = vtanh.pop %v742
        %v795 = vtanh.pop %v745
        %v796 = vtanh.pop %v747
        %v797 = vtanh.pop %v750
        %v798 = vtanh.pop %v752
        %v799 = vtanh.pop %v755
        %v800 = vtanh.pop %v757
        %v801 = vtanh.pop %v760
        %v802 = vtanh.pop %v762
        %v803 = vtanh.pop %v765
        %v804 = vtanh.pop %v767
        %v805 = vtanh.pop %v770
        %v806 = vtanh.pop %v772
        %v807 = vtanh.pop %v775
        %v808 = vtanh.pop %v777
        %v809 = vtanh.pop %v780
        %v810 = vtanh.pop %v782
        %v811 = vtanh.pop %v785
        %v812 = vtanh.pop %v787
        %v813 = vpack.c.bf16 %v790, %v789
        %v814 = vpack.c.bf16 %v792, %v791
        %v815 = vpack.c.bf16 %v794, %v793
        %v816 = vpack.c.bf16 %v796, %v795
        %v817 = vpack.c.bf16 %v798, %v797
        %v818 = vpack.c.bf16 %v800, %v799
        %v819 = vpack.c.bf16 %v802, %v801
        %v820 = vpack.c.bf16 %v804, %v803
        %v821 = vpack.c.bf16 %v806, %v805
        %v822 = vpack.c.bf16 %v808, %v807
        %v823 = vpack.c.bf16 %v810, %v809
        %v824 = vpack.c.bf16 %v812, %v811
        %v825 = vld [vmem:[%s4] sm:$0xf]
        %v826 = vld [vmem:[%s4 + $0x4] sm:$0xf]
        %v827 = vld [vmem:[%s4 + $0x8] sm:$0xf]
        %v828 = vld [vmem:[%s4 + $0xc] sm:$0xf]
        %v829 = vld [vmem:[%s4 + $0x10] sm:$0xf]
        %v830 = vld [vmem:[%s4 + $0x14] sm:$0xf]
        %v831 = vld [vmem:[%s4 + $0x18] sm:$0xf]
        %v832 = vld [vmem:[%s4 + $0x1c] sm:$0xf]
        %v833 = vld [vmem:[%s4 + $0x20] sm:$0xf]
        %v834 = vld [vmem:[%s4 + $0x24] sm:$0xf]
        %v835 = vld [vmem:[%s4 + $0x28] sm:$0xf]
        %v836 = vld [vmem:[%s4 + $0x2c] sm:$0xf]
        %v837 = vld [vmem:[%s4 + $0x30] sm:$0xf]
        %v838 = vld [vmem:[%s4 + $0x34] sm:$0xf]
        %v839 = vld [vmem:[%s4 + $0x38] sm:$0xf]
        %v840 = vld [vmem:[%s4 + $0x3c] sm:$0xf]
        %v841 = vld [vmem:[%s5] sm:$0x1]
        %v843 = vperm.slane %v841, 0
        %v861 = vunpack.c.l.b16 %v825
        %v862 = vunpack.c.l.b16 %v826
        %v863 = vunpack.c.l.b16 %v827
        %v864 = vunpack.c.l.b16 %v828
        %v865 = vunpack.c.l.b16 %v829
        %v866 = vunpack.c.l.b16 %v830
        %v867 = vunpack.c.l.b16 %v831
        %v868 = vunpack.c.l.b16 %v832
        %v869 = vunpack.c.l.b16 %v833
        %v870 = vunpack.c.l.b16 %v834
        %v871 = vunpack.c.l.b16 %v835
        %v872 = vunpack.c.l.b16 %v836
        %v873 = vunpack.c.l.b16 %v837
        %v874 = vunpack.c.l.b16 %v838
        %v875 = vunpack.c.l.b16 %v839
        %v876 = vunpack.c.l.b16 %v840
        %v877 = vpack.c.b16 %v862, %v861
        %v878 = vpack.c.b16 %v864, %v863
        %v879 = vpack.c.b16 %v866, %v865
        %v880 = vpack.c.b16 %v868, %v867
        %v881 = vpack.c.b16 %v870, %v869
        %v882 = vpack.c.b16 %v872, %v871
        %v883 = vpack.c.b16 %v874, %v873
        %v884 = vpack.c.b16 %v876, %v875
        %893 = vmatpush.bf16.msra.mxu0 %v884
        %894 = vmatpush.bf16.msra.mxu0 %v883
        %895 = vmatpush.bf16.msra.mxu0 %v882
        %896 = vmatpush.bf16.msra.mxu0 %v881
        %897 = vmatpush.bf16.msra.mxu0 %v880
        %898 = vmatpush.bf16.msra.mxu0 %v879
        %899 = vmatpush.bf16.msra.mxu0 %v878
        %900 = vmatpush.bf16.msra.mxu0 %v877
        %901 = vmatmul.bf16.gmra.mxu0 %v813
        %v902 = vpop.f32.mrf.mxu0
        %v903 = vadd.f32 %v843, %v902
        %v904 = vpop.f32.mrf.mxu0
        %v905 = vadd.f32 %v843, %v904
        %906 = vmatmul.bf16.gmra.mxu0 %v814
        %v907 = vpop.f32.mrf.mxu0
        %v908 = vadd.f32 %v843, %v907
        %v909 = vpop.f32.mrf.mxu0
        %v910 = vadd.f32 %v843, %v909
        %911 = vmatmul.bf16.gmra.mxu0 %v815
        %v912 = vpop.f32.mrf.mxu0
        %v913 = vadd.f32 %v843, %v912
        %v914 = vpop.f32.mrf.mxu0
        %v915 = vadd.f32 %v843, %v914
        %916 = vmatmul.bf16.gmra.mxu0 %v816
        %v917 = vpop.f32.mrf.mxu0
        %v918 = vadd.f32 %v843, %v917
        %v919 = vpop.f32.mrf.mxu0
        %v920 = vadd.f32 %v843, %v919
        %921 = vmatmul.bf16.gmra.mxu0 %v817
        %v922 = vpop.f32.mrf.mxu0
        %v923 = vadd.f32 %v843, %v922
        %v924 = vpop.f32.mrf.mxu0
        %v925 = vadd.f32 %v843, %v924
        %926 = vmatmul.bf16.gmra.mxu0 %v818
        %v927 = vpop.f32.mrf.mxu0
        %v928 = vadd.f32 %v843, %v927
        %v929 = vpop.f32.mrf.mxu0
        %v930 = vadd.f32 %v843, %v929
        %931 = vmatmul.bf16.gmra.mxu0 %v819
        %v932 = vpop.f32.mrf.mxu0
        %v933 = vadd.f32 %v843, %v932
        %v934 = vpop.f32.mrf.mxu0
        %v935 = vadd.f32 %v843, %v934
        %936 = vmatmul.bf16.gmra.mxu0 %v820
        %v937 = vpop.f32.mrf.mxu0
        %v938 = vadd.f32 %v843, %v937
        %v939 = vpop.f32.mrf.mxu0
        %v940 = vadd.f32 %v843, %v939
        %941 = vmatmul.bf16.gmra.mxu0 %v821
        %v942 = vpop.f32.mrf.mxu0
        %v943 = vadd.f32 %v843, %v942
        %v944 = vpop.f32.mrf.mxu0
        %v945 = vadd.f32 %v843, %v944
        %946 = vmatmul.bf16.gmra.mxu0 %v822
        %v947 = vpop.f32.mrf.mxu0
        %v948 = vadd.f32 %v843, %v947
        %v949 = vpop.f32.mrf.mxu0
        %v950 = vadd.f32 %v843, %v949
        %951 = vmatmul.bf16.gmra.mxu0 %v823
        %v952 = vpop.f32.mrf.mxu0
        %v953 = vadd.f32 %v843, %v952
        %v954 = vpop.f32.mrf.mxu0
        %v955 = vadd.f32 %v843, %v954
        %956 = vmatmul.bf16.gmra.mxu0 %v824
        %v957 = vpop.f32.mrf.mxu0
        %v958 = vadd.f32 %v843, %v957
        %v959 = vpop.f32.mrf.mxu0
        %v960 = vadd.f32 %v843, %v959
        %961 = vdwg.mxu0
        %v962 = vmax.f32 %v903, 0.0
        %v963 = vmax.f32 %v905, 0.0
        %v964 = vmax.f32 %v908, 0.0
        %v965 = vmax.f32 %v910, 0.0
        %v966 = vmax.f32 %v913, 0.0
        %v967 = vmax.f32 %v915, 0.0
        %v968 = vmax.f32 %v918, 0.0
        %v969 = vmax.f32 %v920, 0.0
        %v970 = vmax.f32 %v923, 0.0
        %v971 = vmax.f32 %v925, 0.0
        %v972 = vmax.f32 %v928, 0.0
        %v973 = vmax.f32 %v930, 0.0
        %v974 = vmax.f32 %v933, 0.0
        %v975 = vmax.f32 %v935, 0.0
        %v976 = vmax.f32 %v938, 0.0
        %v977 = vmax.f32 %v940, 0.0
        %v978 = vmax.f32 %v943, 0.0
        %v979 = vmax.f32 %v945, 0.0
        %v980 = vmax.f32 %v948, 0.0
        %v981 = vmax.f32 %v950, 0.0
        %v982 = vmax.f32 %v953, 0.0
        %v983 = vmax.f32 %v955, 0.0
        %v984 = vmax.f32 %v958, 0.0
        %v985 = vmax.f32 %v960, 0.0
        %v986 = vand.u32 2147483647, %v903
        %v987 = vand.u32 2147483647, %v905
        %v988 = vand.u32 2147483647, %v908
        %v989 = vand.u32 2147483647, %v910
        %v990 = vand.u32 2147483647, %v913
        %v991 = vand.u32 2147483647, %v915
        %v992 = vand.u32 2147483647, %v918
        %v993 = vand.u32 2147483647, %v920
        %v994 = vand.u32 2147483647, %v923
        %v995 = vand.u32 2147483647, %v925
        %v996 = vand.u32 2147483647, %v928
        %v997 = vand.u32 2147483647, %v930
        %v998 = vand.u32 2147483647, %v933
        %v999 = vand.u32 2147483647, %v935
        %v1000 = vand.u32 2147483647, %v938
        %v1001 = vand.u32 2147483647, %v940
        %v1002 = vand.u32 2147483647, %v943
        %v1003 = vand.u32 2147483647, %v945
        %v1004 = vand.u32 2147483647, %v948
        %v1005 = vand.u32 2147483647, %v950
        %v1006 = vand.u32 2147483647, %v953
        %v1007 = vand.u32 2147483647, %v955
        %v1008 = vand.u32 2147483647, %v958
        %v1009 = vand.u32 2147483647, %v960
        %v1010 = vsub.f32 0.0, %v986
        %v1011 = vsub.f32 0.0, %v987
        %v1012 = vsub.f32 0.0, %v988
        %v1013 = vsub.f32 0.0, %v989
        %v1014 = vsub.f32 0.0, %v990
        %v1015 = vsub.f32 0.0, %v991
        %v1016 = vsub.f32 0.0, %v992
        %v1017 = vsub.f32 0.0, %v993
        %v1018 = vsub.f32 0.0, %v994
        %v1019 = vsub.f32 0.0, %v995
        %v1020 = vsub.f32 0.0, %v996
        %v1021 = vsub.f32 0.0, %v997
        %v1022 = vsub.f32 0.0, %v998
        %v1023 = vsub.f32 0.0, %v999
        %v1024 = vsub.f32 0.0, %v1000
        %v1025 = vsub.f32 0.0, %v1001
        %v1026 = vsub.f32 0.0, %v1002
        %v1027 = vsub.f32 0.0, %v1003
        %v1028 = vsub.f32 0.0, %v1004
        %v1029 = vsub.f32 0.0, %v1005
        %v1030 = vsub.f32 0.0, %v1006
        %v1031 = vsub.f32 0.0, %v1007
        %v1032 = vsub.f32 0.0, %v1008
        %v1033 = vsub.f32 0.0, %v1009
        %v1034 = vmul.f32 %v1010, 1.442695
        %v1035 = vpow.pop %v1034
        %v1036 = vmul.f32 %v1011, 1.442695
        %v1037 = vpow.pop %v1036
        %v1038 = vmul.f32 %v1012, 1.442695
        %v1039 = vpow.pop %v1038
        %v1040 = vmul.f32 %v1013, 1.442695
        %v1041 = vpow.pop %v1040
        %v1042 = vmul.f32 %v1014, 1.442695
        %v1043 = vpow.pop %v1042
        %v1044 = vmul.f32 %v1015, 1.442695
        %v1045 = vpow.pop %v1044
        %v1046 = vmul.f32 %v1016, 1.442695
        %v1047 = vpow.pop %v1046
        %v1048 = vmul.f32 %v1017, 1.442695
        %v1049 = vpow.pop %v1048
        %v1050 = vmul.f32 %v1018, 1.442695
        %v1051 = vpow.pop %v1050
        %v1052 = vmul.f32 %v1019, 1.442695
        %v1053 = vpow.pop %v1052
        %v1054 = vmul.f32 %v1020, 1.442695
        %v1055 = vpow.pop %v1054
        %v1056 = vmul.f32 %v1021, 1.442695
        %v1057 = vpow.pop %v1056
        %v1058 = vmul.f32 %v1022, 1.442695
        %v1059 = vpow.pop %v1058
        %v1060 = vmul.f32 %v1023, 1.442695
        %v1061 = vpow.pop %v1060
        %v1062 = vmul.f32 %v1024, 1.442695
        %v1063 = vpow.pop %v1062
        %v1064 = vmul.f32 %v1025, 1.442695
        %v1065 = vpow.pop %v1064
        %v1066 = vmul.f32 %v1026, 1.442695
        %v1067 = vpow.pop %v1066
        %v1068 = vmul.f32 %v1027, 1.442695
        %v1069 = vpow.pop %v1068
        %v1070 = vmul.f32 %v1028, 1.442695
        %v1071 = vpow.pop %v1070
        %v1072 = vmul.f32 %v1029, 1.442695
        %v1073 = vpow.pop %v1072
        %v1074 = vmul.f32 %v1030, 1.442695
        %v1075 = vpow.pop %v1074
        %v1076 = vmul.f32 %v1031, 1.442695
        %v1077 = vpow.pop %v1076
        %v1078 = vmul.f32 %v1032, 1.442695
        %v1079 = vpow.pop %v1078
        %v1080 = vmul.f32 %v1033, 1.442695
        %v1081 = vpow.pop %v1080
        %v1082 = vadd.f32 %v1035, 1.0
        %v1083 = vlog2.pop %v1082
        %v1084 = vmul.f32 %v1083, 0.6931472
        %v1085 = vmul.f32 -0.5, %v1035
        %v1086 = vadd.f32 %v1085, 1.0
        %v1087 = vmul.f32 %v1086, %v1035
        %v1088 = vand.u32 2147483647, %v1035
        %vm1089 = vcmp.lt.f32.partialorder %v1088, 0.0004427343
        %v1090 = vsel %vm1089, %v1087, %v1084
        %v1091 = vadd.f32 %v1037, 1.0
        %v1092 = vlog2.pop %v1091
        %v1093 = vmul.f32 %v1092, 0.6931472
        %v1094 = vmul.f32 -0.5, %v1037
        %v1095 = vadd.f32 %v1094, 1.0
        %v1096 = vmul.f32 %v1095, %v1037
        %v1097 = vand.u32 2147483647, %v1037
        %vm1098 = vcmp.lt.f32.partialorder %v1097, 0.0004427343
        %v1099 = vsel %vm1098, %v1096, %v1093
        %v1100 = vadd.f32 %v1039, 1.0
        %v1101 = vlog2.pop %v1100
        %v1102 = vmul.f32 %v1101, 0.6931472
        %v1103 = vmul.f32 -0.5, %v1039
        %v1104 = vadd.f32 %v1103, 1.0
        %v1105 = vmul.f32 %v1104, %v1039
        %v1106 = vand.u32 2147483647, %v1039
        %vm1107 = vcmp.lt.f32.partialorder %v1106, 0.0004427343
        %v1108 = vsel %vm1107, %v1105, %v1102
        %v1109 = vadd.f32 %v1041, 1.0
        %v1110 = vlog2.pop %v1109
        %v1111 = vmul.f32 %v1110, 0.6931472
        %v1112 = vmul.f32 -0.5, %v1041
        %v1113 = vadd.f32 %v1112, 1.0
        %v1114 = vmul.f32 %v1113, %v1041
        %v1115 = vand.u32 2147483647, %v1041
        %vm1116 = vcmp.lt.f32.partialorder %v1115, 0.0004427343
        %v1117 = vsel %vm1116, %v1114, %v1111
        %v1118 = vadd.f32 %v1043, 1.0
        %v1119 = vlog2.pop %v1118
        %v1120 = vmul.f32 %v1119, 0.6931472
        %v1121 = vmul.f32 -0.5, %v1043
        %v1122 = vadd.f32 %v1121, 1.0
        %v1123 = vmul.f32 %v1122, %v1043
        %v1124 = vand.u32 2147483647, %v1043
        %vm1125 = vcmp.lt.f32.partialorder %v1124, 0.0004427343
        %v1126 = vsel %vm1125, %v1123, %v1120
        %v1127 = vadd.f32 %v1045, 1.0
        %v1128 = vlog2.pop %v1127
        %v1129 = vmul.f32 %v1128, 0.6931472
        %v1130 = vmul.f32 -0.5, %v1045
        %v1131 = vadd.f32 %v1130, 1.0
        %v1132 = vmul.f32 %v1131, %v1045
        %v1133 = vand.u32 2147483647, %v1045
        %vm1134 = vcmp.lt.f32.partialorder %v1133, 0.0004427343
        %v1135 = vsel %vm1134, %v1132, %v1129
        %v1136 = vadd.f32 %v1047, 1.0
        %v1137 = vlog2.pop %v1136
        %v1138 = vmul.f32 %v1137, 0.6931472
        %v1139 = vmul.f32 -0.5, %v1047
        %v1140 = vadd.f32 %v1139, 1.0
        %v1141 = vmul.f32 %v1140, %v1047
        %v1142 = vand.u32 2147483647, %v1047
        %vm1143 = vcmp.lt.f32.partialorder %v1142, 0.0004427343
        %v1144 = vsel %vm1143, %v1141, %v1138
        %v1145 = vadd.f32 %v1049, 1.0
        %v1146 = vlog2.pop %v1145
        %v1147 = vmul.f32 %v1146, 0.6931472
        %v1148 = vmul.f32 -0.5, %v1049
        %v1149 = vadd.f32 %v1148, 1.0
        %v1150 = vmul.f32 %v1149, %v1049
        %v1151 = vand.u32 2147483647, %v1049
        %vm1152 = vcmp.lt.f32.partialorder %v1151, 0.0004427343
        %v1153 = vsel %vm1152, %v1150, %v1147
        %v1154 = vadd.f32 %v1051, 1.0
        %v1155 = vlog2.pop %v1154
        %v1156 = vmul.f32 %v1155, 0.6931472
        %v1157 = vmul.f32 -0.5, %v1051
        %v1158 = vadd.f32 %v1157, 1.0
        %v1159 = vmul.f32 %v1158, %v1051
        %v1160 = vand.u32 2147483647, %v1051
        %vm1161 = vcmp.lt.f32.partialorder %v1160, 0.0004427343
        %v1162 = vsel %vm1161, %v1159, %v1156
        %v1163 = vadd.f32 %v1053, 1.0
        %v1164 = vlog2.pop %v1163
        %v1165 = vmul.f32 %v1164, 0.6931472
        %v1166 = vmul.f32 -0.5, %v1053
        %v1167 = vadd.f32 %v1166, 1.0
        %v1168 = vmul.f32 %v1167, %v1053
        %v1169 = vand.u32 2147483647, %v1053
        %vm1170 = vcmp.lt.f32.partialorder %v1169, 0.0004427343
        %v1171 = vsel %vm1170, %v1168, %v1165
        %v1172 = vadd.f32 %v1055, 1.0
        %v1173 = vlog2.pop %v1172
        %v1174 = vmul.f32 %v1173, 0.6931472
        %v1175 = vmul.f32 -0.5, %v1055
        %v1176 = vadd.f32 %v1175, 1.0
        %v1177 = vmul.f32 %v1176, %v1055
        %v1178 = vand.u32 2147483647, %v1055
        %vm1179 = vcmp.lt.f32.partialorder %v1178, 0.0004427343
        %v1180 = vsel %vm1179, %v1177, %v1174
        %v1181 = vadd.f32 %v1057, 1.0
        %v1182 = vlog2.pop %v1181
        %v1183 = vmul.f32 %v1182, 0.6931472
        %v1184 = vmul.f32 -0.5, %v1057
        %v1185 = vadd.f32 %v1184, 1.0
        %v1186 = vmul.f32 %v1185, %v1057
        %v1187 = vand.u32 2147483647, %v1057
        %vm1188 = vcmp.lt.f32.partialorder %v1187, 0.0004427343
        %v1189 = vsel %vm1188, %v1186, %v1183
        %v1190 = vadd.f32 %v1059, 1.0
        %v1191 = vlog2.pop %v1190
        %v1192 = vmul.f32 %v1191, 0.6931472
        %v1193 = vmul.f32 -0.5, %v1059
        %v1194 = vadd.f32 %v1193, 1.0
        %v1195 = vmul.f32 %v1194, %v1059
        %v1196 = vand.u32 2147483647, %v1059
        %vm1197 = vcmp.lt.f32.partialorder %v1196, 0.0004427343
        %v1198 = vsel %vm1197, %v1195, %v1192
        %v1199 = vadd.f32 %v1061, 1.0
        %v1200 = vlog2.pop %v1199
        %v1201 = vmul.f32 %v1200, 0.6931472
        %v1202 = vmul.f32 -0.5, %v1061
        %v1203 = vadd.f32 %v1202, 1.0
        %v1204 = vmul.f32 %v1203, %v1061
        %v1205 = vand.u32 2147483647, %v1061
        %vm1206 = vcmp.lt.f32.partialorder %v1205, 0.0004427343
        %v1207 = vsel %vm1206, %v1204, %v1201
        %v1208 = vadd.f32 %v1063, 1.0
        %v1209 = vlog2.pop %v1208
        %v1210 = vmul.f32 %v1209, 0.6931472
        %v1211 = vmul.f32 -0.5, %v1063
        %v1212 = vadd.f32 %v1211, 1.0
        %v1213 = vmul.f32 %v1212, %v1063
        %v1214 = vand.u32 2147483647, %v1063
        %vm1215 = vcmp.lt.f32.partialorder %v1214, 0.0004427343
        %v1216 = vsel %vm1215, %v1213, %v1210
        %v1217 = vadd.f32 %v1065, 1.0
        %v1218 = vlog2.pop %v1217
        %v1219 = vmul.f32 %v1218, 0.6931472
        %v1220 = vmul.f32 -0.5, %v1065
        %v1221 = vadd.f32 %v1220, 1.0
        %v1222 = vmul.f32 %v1221, %v1065
        %v1223 = vand.u32 2147483647, %v1065
        %vm1224 = vcmp.lt.f32.partialorder %v1223, 0.0004427343
        %v1225 = vsel %vm1224, %v1222, %v1219
        %v1226 = vadd.f32 %v1067, 1.0
        %v1227 = vlog2.pop %v1226
        %v1228 = vmul.f32 %v1227, 0.6931472
        %v1229 = vmul.f32 -0.5, %v1067
        %v1230 = vadd.f32 %v1229, 1.0
        %v1231 = vmul.f32 %v1230, %v1067
        %v1232 = vand.u32 2147483647, %v1067
        %vm1233 = vcmp.lt.f32.partialorder %v1232, 0.0004427343
        %v1234 = vsel %vm1233, %v1231, %v1228
        %v1235 = vadd.f32 %v1069, 1.0
        %v1236 = vlog2.pop %v1235
        %v1237 = vmul.f32 %v1236, 0.6931472
        %v1238 = vmul.f32 -0.5, %v1069
        %v1239 = vadd.f32 %v1238, 1.0
        %v1240 = vmul.f32 %v1239, %v1069
        %v1241 = vand.u32 2147483647, %v1069
        %vm1242 = vcmp.lt.f32.partialorder %v1241, 0.0004427343
        %v1243 = vsel %vm1242, %v1240, %v1237
        %v1244 = vadd.f32 %v1071, 1.0
        %v1245 = vlog2.pop %v1244
        %v1246 = vmul.f32 %v1245, 0.6931472
        %v1247 = vmul.f32 -0.5, %v1071
        %v1248 = vadd.f32 %v1247, 1.0
        %v1249 = vmul.f32 %v1248, %v1071
        %v1250 = vand.u32 2147483647, %v1071
        %vm1251 = vcmp.lt.f32.partialorder %v1250, 0.0004427343
        %v1252 = vsel %vm1251, %v1249, %v1246
        %v1253 = vadd.f32 %v1073, 1.0
        %v1254 = vlog2.pop %v1253
        %v1255 = vmul.f32 %v1254, 0.6931472
        %v1256 = vmul.f32 -0.5, %v1073
        %v1257 = vadd.f32 %v1256, 1.0
        %v1258 = vmul.f32 %v1257, %v1073
        %v1259 = vand.u32 2147483647, %v1073
        %vm1260 = vcmp.lt.f32.partialorder %v1259, 0.0004427343
        %v1261 = vsel %vm1260, %v1258, %v1255
        %v1262 = vadd.f32 %v1075, 1.0
        %v1263 = vlog2.pop %v1262
        %v1264 = vmul.f32 %v1263, 0.6931472
        %v1265 = vmul.f32 -0.5, %v1075
        %v1266 = vadd.f32 %v1265, 1.0
        %v1267 = vmul.f32 %v1266, %v1075
        %v1268 = vand.u32 2147483647, %v1075
        %vm1269 = vcmp.lt.f32.partialorder %v1268, 0.0004427343
        %v1270 = vsel %vm1269, %v1267, %v1264
        %v1271 = vadd.f32 %v1077, 1.0
        %v1272 = vlog2.pop %v1271
        %v1273 = vmul.f32 %v1272, 0.6931472
        %v1274 = vmul.f32 -0.5, %v1077
        %v1275 = vadd.f32 %v1274, 1.0
        %v1276 = vmul.f32 %v1275, %v1077
        %v1277 = vand.u32 2147483647, %v1077
        %vm1278 = vcmp.lt.f32.partialorder %v1277, 0.0004427343
        %v1279 = vsel %vm1278, %v1276, %v1273
        %v1280 = vadd.f32 %v1079, 1.0
        %v1281 = vlog2.pop %v1280
        %v1282 = vmul.f32 %v1281, 0.6931472
        %v1283 = vmul.f32 -0.5, %v1079
        %v1284 = vadd.f32 %v1283, 1.0
        %v1285 = vmul.f32 %v1284, %v1079
        %v1286 = vand.u32 2147483647, %v1079
        %vm1287 = vcmp.lt.f32.partialorder %v1286, 0.0004427343
        %v1288 = vsel %vm1287, %v1285, %v1282
        %v1289 = vadd.f32 %v1081, 1.0
        %v1290 = vlog2.pop %v1289
        %v1291 = vmul.f32 %v1290, 0.6931472
        %v1292 = vmul.f32 -0.5, %v1081
        %v1293 = vadd.f32 %v1292, 1.0
        %v1294 = vmul.f32 %v1293, %v1081
        %v1295 = vand.u32 2147483647, %v1081
        %vm1296 = vcmp.lt.f32.partialorder %v1295, 0.0004427343
        %v1297 = vsel %vm1296, %v1294, %v1291
        %v1298 = vadd.f32 %v962, %v1090
        %v1299 = vadd.f32 %v963, %v1099
        %v1300 = vadd.f32 %v964, %v1108
        %v1301 = vadd.f32 %v965, %v1117
        %v1302 = vadd.f32 %v966, %v1126
        %v1303 = vadd.f32 %v967, %v1135
        %v1304 = vadd.f32 %v968, %v1144
        %v1305 = vadd.f32 %v969, %v1153
        %v1306 = vadd.f32 %v970, %v1162
        %v1307 = vadd.f32 %v971, %v1171
        %v1308 = vadd.f32 %v972, %v1180
        %v1309 = vadd.f32 %v973, %v1189
        %v1310 = vadd.f32 %v974, %v1198
        %v1311 = vadd.f32 %v975, %v1207
        %v1312 = vadd.f32 %v976, %v1216
        %v1313 = vadd.f32 %v977, %v1225
        %v1314 = vadd.f32 %v978, %v1234
        %v1315 = vadd.f32 %v979, %v1243
        %v1316 = vadd.f32 %v980, %v1252
        %v1317 = vadd.f32 %v981, %v1261
        %v1318 = vadd.f32 %v982, %v1270
        %v1319 = vadd.f32 %v983, %v1279
        %v1320 = vadd.f32 %v984, %v1288
        %v1321 = vadd.f32 %v985, %v1297
        %v1322 = vlaneseq
        %v1323 = vand.u32 %v1322, 127
        %vm1324 = vcmp.ge.s32.totalorder %v1323, 32
        %v1325 = vsel %vm1324, %v1298, %v903
        %v1326 = vsel %vm1324, %v1299, %v905
        %v1327 = vsel %vm1324, %v1300, %v908
        %v1328 = vsel %vm1324, %v1301, %v910
        %v1329 = vsel %vm1324, %v1302, %v913
        %v1330 = vsel %vm1324, %v1303, %v915
        %v1331 = vsel %vm1324, %v1304, %v918
        %v1332 = vsel %vm1324, %v1305, %v920
        %v1333 = vsel %vm1324, %v1306, %v923
        %v1334 = vsel %vm1324, %v1307, %v925
        %v1335 = vsel %vm1324, %v1308, %v928
        %v1336 = vsel %vm1324, %v1309, %v930
        %v1337 = vsel %vm1324, %v1310, %v933
        %v1338 = vsel %vm1324, %v1311, %v935
        %v1339 = vsel %vm1324, %v1312, %v938
        %v1340 = vsel %vm1324, %v1313, %v940
        %v1341 = vsel %vm1324, %v1314, %v943
        %v1342 = vsel %vm1324, %v1315, %v945
        %v1343 = vsel %vm1324, %v1316, %v948
        %v1344 = vsel %vm1324, %v1317, %v950
        %v1345 = vsel %vm1324, %v1318, %v953
        %v1346 = vsel %vm1324, %v1319, %v955
        %v1347 = vsel %vm1324, %v1320, %v958
        %v1348 = vsel %vm1324, %v1321, %v960
        %vm1349 = vcmask 523264
        %1350 = vst.msk [vmem:[%s444] sm:$0xff] %vm1349, %v1325
        %1351 = vst.msk [vmem:[%s444 + $0x8] sm:$0xff] %vm1349, %v1326
        %1352 = vst.msk [vmem:[%s444 + $0x10] sm:$0xff] %vm1349, %v1327
        %1353 = vst.msk [vmem:[%s444 + $0x18] sm:$0xff] %vm1349, %v1328
        %1354 = vst.msk [vmem:[%s444 + $0x20] sm:$0xff] %vm1349, %v1329
        %1355 = vst.msk [vmem:[%s444 + $0x28] sm:$0xff] %vm1349, %v1330
        %1356 = vst.msk [vmem:[%s444 + $0x30] sm:$0xff] %vm1349, %v1331
        %1357 = vst.msk [vmem:[%s444 + $0x38] sm:$0xff] %vm1349, %v1332
        %1358 = vst.msk [vmem:[%s444 + $0x40] sm:$0xff] %vm1349, %v1333
        %1359 = vst.msk [vmem:[%s444 + $0x48] sm:$0xff] %vm1349, %v1334
        %1360 = vst.msk [vmem:[%s444 + $0x50] sm:$0xff] %vm1349, %v1335
        %1361 = vst.msk [vmem:[%s444 + $0x58] sm:$0xff] %vm1349, %v1336
        %1362 = vst.msk [vmem:[%s444 + $0x60] sm:$0xff] %vm1349, %v1337
        %1363 = vst.msk [vmem:[%s444 + $0x68] sm:$0xff] %vm1349, %v1338
        %1364 = vst.msk [vmem:[%s444 + $0x70] sm:$0xff] %vm1349, %v1339
        %1365 = vst.msk [vmem:[%s444 + $0x78] sm:$0xff] %vm1349, %v1340
        %1366 = vst.msk [vmem:[%s444 + $0x80] sm:$0xff] %vm1349, %v1341
        %1367 = vst.msk [vmem:[%s444 + $0x88] sm:$0xff] %vm1349, %v1342
        %1368 = vst.msk [vmem:[%s444 + $0x90] sm:$0xff] %vm1349, %v1343
        %1369 = vst.msk [vmem:[%s444 + $0x98] sm:$0xff] %vm1349, %v1344
        %1370 = vst.msk [vmem:[%s444 + $0xa0] sm:$0xff] %vm1349, %v1345
        %1371 = vst.msk [vmem:[%s444 + $0xa8] sm:$0xff] %vm1349, %v1346
        %1372 = vst.msk [vmem:[%s444 + $0xb0] sm:$0xff] %vm1349, %v1347
        %1373 = vst.msk [vmem:[%s444 + $0xb8] sm:$0xff] %vm1349, %v1348
        %v1374 = vld [vmem:[%s437] sm:$0xff]
        %v1375 = vld [vmem:[%s437 + $0x8] sm:$0xff]
        %v1376 = vld [vmem:[%s437 + $0x10] sm:$0xff]
        %v1377 = vld [vmem:[%s437 + $0x18] sm:$0xff]
        %v1378 = vld [vmem:[%s437 + $0x20] sm:$0xff]
        %v1379 = vld [vmem:[%s437 + $0x28] sm:$0xff]
        %v1380 = vld [vmem:[%s437 + $0x30] sm:$0xff]
        %v1381 = vld [vmem:[%s437 + $0x38] sm:$0xff]
        %v1382 = vld [vmem:[%s437 + $0x40] sm:$0xff]
        %v1383 = vld [vmem:[%s437 + $0x48] sm:$0xff]
        %v1384 = vld [vmem:[%s437 + $0x50] sm:$0xff]
        %v1385 = vld [vmem:[%s437 + $0x58] sm:$0xff]
        %v1386 = vld [vmem:[%s437 + $0x60] sm:$0xff]
        %v1387 = vld [vmem:[%s437 + $0x68] sm:$0xff]
        %v1388 = vld [vmem:[%s437 + $0x70] sm:$0xff]
        %v1389 = vld [vmem:[%s437 + $0x78] sm:$0xff]
        %v1390 = vld [vmem:[%s437 + $0x80] sm:$0xff]
        %v1391 = vld [vmem:[%s437 + $0x88] sm:$0xff]
        %v1392 = vld [vmem:[%s437 + $0x90] sm:$0xff]
        %v1393 = vld [vmem:[%s437 + $0x98] sm:$0xff]
        %v1394 = vld [vmem:[%s437 + $0xa0] sm:$0xff]
        %v1395 = vld [vmem:[%s437 + $0xa8] sm:$0xff]
        %v1396 = vld [vmem:[%s437 + $0xb0] sm:$0xff]
        %v1397 = vld [vmem:[%s437 + $0xb8] sm:$0xff]
        %1422 = vrot.lane.b32.xlu0 %v1374, 32
        %v1423 = vpop.permute.xlu0 %1422
        %1424 = vrot.lane.b32.xlu0 %v1375, 32
        %v1425 = vpop.permute.xlu0 %1424
        %1426 = vrot.lane.b32.xlu0 %v1376, 32
        %v1427 = vpop.permute.xlu0 %1426
        %1428 = vrot.lane.b32.xlu0 %v1377, 32
        %v1429 = vpop.permute.xlu0 %1428
        %1430 = vrot.lane.b32.xlu0 %v1378, 32
        %v1431 = vpop.permute.xlu0 %1430
        %1432 = vrot.lane.b32.xlu0 %v1379, 32
        %v1433 = vpop.permute.xlu0 %1432
        %1434 = vrot.lane.b32.xlu0 %v1380, 32
        %v1435 = vpop.permute.xlu0 %1434
        %1436 = vrot.lane.b32.xlu0 %v1381, 32
        %v1437 = vpop.permute.xlu0 %1436
        %1438 = vrot.lane.b32.xlu0 %v1382, 32
        %v1439 = vpop.permute.xlu0 %1438
        %1440 = vrot.lane.b32.xlu0 %v1383, 32
        %v1441 = vpop.permute.xlu0 %1440
        %1442 = vrot.lane.b32.xlu0 %v1384, 32
        %v1443 = vpop.permute.xlu0 %1442
        %1444 = vrot.lane.b32.xlu0 %v1385, 32
        %v1445 = vpop.permute.xlu0 %1444
        %1446 = vrot.lane.b32.xlu0 %v1386, 32
        %v1447 = vpop.permute.xlu0 %1446
        %1448 = vrot.lane.b32.xlu0 %v1387, 32
        %v1449 = vpop.permute.xlu0 %1448
        %1450 = vrot.lane.b32.xlu0 %v1388, 32
        %v1451 = vpop.permute.xlu0 %1450
        %1452 = vrot.lane.b32.xlu0 %v1389, 32
        %v1453 = vpop.permute.xlu0 %1452
        %1454 = vrot.lane.b32.xlu0 %v1390, 32
        %v1455 = vpop.permute.xlu0 %1454
        %1456 = vrot.lane.b32.xlu0 %v1391, 32
        %v1457 = vpop.permute.xlu0 %1456
        %1458 = vrot.lane.b32.xlu0 %v1392, 32
        %v1459 = vpop.permute.xlu0 %1458
        %1460 = vrot.lane.b32.xlu0 %v1393, 32
        %v1461 = vpop.permute.xlu0 %1460
        %1462 = vrot.lane.b32.xlu0 %v1394, 32
        %v1463 = vpop.permute.xlu0 %1462
        %1464 = vrot.lane.b32.xlu0 %v1395, 32
        %v1465 = vpop.permute.xlu0 %1464
        %1466 = vrot.lane.b32.xlu0 %v1396, 32
        %v1467 = vpop.permute.xlu0 %1466
        %1468 = vrot.lane.b32.xlu0 %v1397, 32
        %v1469 = vpop.permute.xlu0 %1468
        %v1494 = vmul.f32 %v1298, %v1423
        %v1495 = vmul.f32 %v1299, %v1425
        %v1496 = vmul.f32 %v1300, %v1427
        %v1497 = vmul.f32 %v1301, %v1429
        %v1498 = vmul.f32 %v1302, %v1431
        %v1499 = vmul.f32 %v1303, %v1433
        %v1500 = vmul.f32 %v1304, %v1435
        %v1501 = vmul.f32 %v1305, %v1437
        %v1502 = vmul.f32 %v1306, %v1439
        %v1503 = vmul.f32 %v1307, %v1441
        %v1504 = vmul.f32 %v1308, %v1443
        %v1505 = vmul.f32 %v1309, %v1445
        %v1506 = vmul.f32 %v1310, %v1447
        %v1507 = vmul.f32 %v1311, %v1449
        %v1508 = vmul.f32 %v1312, %v1451
        %v1509 = vmul.f32 %v1313, %v1453
        %v1510 = vmul.f32 %v1314, %v1455
        %v1511 = vmul.f32 %v1315, %v1457
        %v1512 = vmul.f32 %v1316, %v1459
        %v1513 = vmul.f32 %v1317, %v1461
        %v1514 = vmul.f32 %v1318, %v1463
        %v1515 = vmul.f32 %v1319, %v1465
        %v1516 = vmul.f32 %v1320, %v1467
        %v1517 = vmul.f32 %v1321, %v1469
        %1542 = vrot.lane.b32.xlu0 %v1494, 96
        %v1543 = vpop.permute.xlu0 %1542
        %1544 = vrot.lane.b32.xlu0 %v1495, 96
        %v1545 = vpop.permute.xlu0 %1544
        %1546 = vrot.lane.b32.xlu0 %v1496, 96
        %v1547 = vpop.permute.xlu0 %1546
        %1548 = vrot.lane.b32.xlu0 %v1497, 96
        %v1549 = vpop.permute.xlu0 %1548
        %1550 = vrot.lane.b32.xlu0 %v1498, 96
        %v1551 = vpop.permute.xlu0 %1550
        %1552 = vrot.lane.b32.xlu0 %v1499, 96
        %v1553 = vpop.permute.xlu0 %1552
        %1554 = vrot.lane.b32.xlu0 %v1500, 96
        %v1555 = vpop.permute.xlu0 %1554
        %1556 = vrot.lane.b32.xlu0 %v1501, 96
        %v1557 = vpop.permute.xlu0 %1556
        %1558 = vrot.lane.b32.xlu0 %v1502, 96
        %v1559 = vpop.permute.xlu0 %1558
        %1560 = vrot.lane.b32.xlu0 %v1503, 96
        %v1561 = vpop.permute.xlu0 %1560
        %1562 = vrot.lane.b32.xlu0 %v1504, 96
        %v1563 = vpop.permute.xlu0 %1562
        %1564 = vrot.lane.b32.xlu0 %v1505, 96
        %v1565 = vpop.permute.xlu0 %1564
        %1566 = vrot.lane.b32.xlu0 %v1506, 96
        %v1567 = vpop.permute.xlu0 %1566
        %1568 = vrot.lane.b32.xlu0 %v1507, 96
        %v1569 = vpop.permute.xlu0 %1568
        %1570 = vrot.lane.b32.xlu0 %v1508, 96
        %v1571 = vpop.permute.xlu0 %1570
        %1572 = vrot.lane.b32.xlu0 %v1509, 96
        %v1573 = vpop.permute.xlu0 %1572
        %1574 = vrot.lane.b32.xlu0 %v1510, 96
        %v1575 = vpop.permute.xlu0 %1574
        %1576 = vrot.lane.b32.xlu0 %v1511, 96
        %v1577 = vpop.permute.xlu0 %1576
        %1578 = vrot.lane.b32.xlu0 %v1512, 96
        %v1579 = vpop.permute.xlu0 %1578
        %1580 = vrot.lane.b32.xlu0 %v1513, 96
        %v1581 = vpop.permute.xlu0 %1580
        %1582 = vrot.lane.b32.xlu0 %v1514, 96
        %v1583 = vpop.permute.xlu0 %1582
        %1584 = vrot.lane.b32.xlu0 %v1515, 96
        %v1585 = vpop.permute.xlu0 %1584
        %1586 = vrot.lane.b32.xlu0 %v1516, 96
        %v1587 = vpop.permute.xlu0 %1586
        %1588 = vrot.lane.b32.xlu0 %v1517, 96
        %v1589 = vpop.permute.xlu0 %1588
        %v1614 = vadd.f32 %v903, %v1543
        %v1615 = vadd.f32 %v905, %v1545
        %v1616 = vadd.f32 %v908, %v1547
        %v1617 = vadd.f32 %v910, %v1549
        %v1618 = vadd.f32 %v913, %v1551
        %v1619 = vadd.f32 %v915, %v1553
        %v1620 = vadd.f32 %v918, %v1555
        %v1621 = vadd.f32 %v920, %v1557
        %v1622 = vadd.f32 %v923, %v1559
        %v1623 = vadd.f32 %v925, %v1561
        %v1624 = vadd.f32 %v928, %v1563
        %v1625 = vadd.f32 %v930, %v1565
        %v1626 = vadd.f32 %v933, %v1567
        %v1627 = vadd.f32 %v935, %v1569
        %v1628 = vadd.f32 %v938, %v1571
        %v1629 = vadd.f32 %v940, %v1573
        %v1630 = vadd.f32 %v943, %v1575
        %v1631 = vadd.f32 %v945, %v1577
        %v1632 = vadd.f32 %v948, %v1579
        %v1633 = vadd.f32 %v950, %v1581
        %v1634 = vadd.f32 %v953, %v1583
        %v1635 = vadd.f32 %v955, %v1585
        %v1636 = vadd.f32 %v958, %v1587
        %v1637 = vadd.f32 %v960, %v1589
        %v1638 = vpack.c.bf16 %v1615, %v1614
        %v1639 = vpack.c.bf16 %v1617, %v1616
        %v1640 = vpack.c.bf16 %v1619, %v1618
        %v1641 = vpack.c.bf16 %v1621, %v1620
        %v1642 = vpack.c.bf16 %v1623, %v1622
        %v1643 = vpack.c.bf16 %v1625, %v1624
        %v1644 = vpack.c.bf16 %v1627, %v1626
        %v1645 = vpack.c.bf16 %v1629, %v1628
        %v1646 = vpack.c.bf16 %v1631, %v1630
        %v1647 = vpack.c.bf16 %v1633, %v1632
        %v1648 = vpack.c.bf16 %v1635, %v1634
        %v1649 = vpack.c.bf16 %v1637, %v1636
        %v1650 = vld [vmem:[%s6] sm:$0xf]
        %v1651 = vld [vmem:[%s6 + $0x4] sm:$0xf]
        %v1652 = vld [vmem:[%s6 + $0x8] sm:$0xf]
        %v1653 = vld [vmem:[%s6 + $0xc] sm:$0xf]
        %v1654 = vld [vmem:[%s7] sm:$0x1]
        %v1656 = vperm.slane %v1654, 0
        %v1662 = vunpack.c.l.b16 %v1650
        %v1663 = vunpack.c.l.b16 %v1651
        %v1664 = vunpack.c.l.b16 %v1652
        %v1665 = vunpack.c.l.b16 %v1653
        %v1666 = vpack.c.b16 %v1663, %v1662
        %v1667 = vpack.c.b16 %v1665, %v1664
        %vm1670 = vcmask 261120
        %v1672 = vsel %vm1670, %v1638, 0
        %v1675 = vsel %vm1670, %v1639, 0
        %v1678 = vsel %vm1670, %v1640, 0
        %v1681 = vsel %vm1670, %v1641, 0
        %v1684 = vsel %vm1670, %v1642, 0
        %v1687 = vsel %vm1670, %v1643, 0
        %v1690 = vsel %vm1670, %v1644, 0
        %v1693 = vsel %vm1670, %v1645, 0
        %v1696 = vsel %vm1670, %v1646, 0
        %v1699 = vsel %vm1670, %v1647, 0
        %v1702 = vsel %vm1670, %v1648, 0
        %v1705 = vsel %vm1670, %v1649, 0
        %1707 = vmatpush.bf16.msra.mxu0 0
        %1708 = vmatpush.bf16.msra.mxu0 0
        %1709 = vmatpush.bf16.msra.mxu0 0
        %1710 = vmatpush.bf16.msra.mxu0 0
        %1711 = vmatpush.bf16.msra.mxu0 0
        %1712 = vmatpush.bf16.msra.mxu0 0
        %1713 = vmatpush.bf16.msra.mxu0 %v1667
        %1714 = vmatpush.bf16.msra.mxu0 %v1666
        %1715 = vmatmul.bf16.gmra.mxu0 %v1672
        %v1716 = vpop.f32.mrf.mxu0
        %v1717 = vadd.f32 %v1656, %v1716
        %v1718 = vpop.f32.mrf.mxu0
        %v1719 = vadd.f32 %v1656, %v1718
        %1720 = vmatmul.bf16.gmra.mxu0 %v1675
        %v1721 = vpop.f32.mrf.mxu0
        %v1722 = vadd.f32 %v1656, %v1721
        %v1723 = vpop.f32.mrf.mxu0
        %v1724 = vadd.f32 %v1656, %v1723
        %1725 = vmatmul.bf16.gmra.mxu0 %v1678
        %v1726 = vpop.f32.mrf.mxu0
        %v1727 = vadd.f32 %v1656, %v1726
        %v1728 = vpop.f32.mrf.mxu0
        %v1729 = vadd.f32 %v1656, %v1728
        %1730 = vmatmul.bf16.gmra.mxu0 %v1681
        %v1731 = vpop.f32.mrf.mxu0
        %v1732 = vadd.f32 %v1656, %v1731
        %v1733 = vpop.f32.mrf.mxu0
        %v1734 = vadd.f32 %v1656, %v1733
        %1735 = vmatmul.bf16.gmra.mxu0 %v1684
        %v1736 = vpop.f32.mrf.mxu0
        %v1737 = vadd.f32 %v1656, %v1736
        %v1738 = vpop.f32.mrf.mxu0
        %v1739 = vadd.f32 %v1656, %v1738
        %1740 = vmatmul.bf16.gmra.mxu0 %v1687
        %v1741 = vpop.f32.mrf.mxu0
        %v1742 = vadd.f32 %v1656, %v1741
        %v1743 = vpop.f32.mrf.mxu0
        %v1744 = vadd.f32 %v1656, %v1743
        %1745 = vmatmul.bf16.gmra.mxu0 %v1690
        %v1746 = vpop.f32.mrf.mxu0
        %v1747 = vadd.f32 %v1656, %v1746
        %v1748 = vpop.f32.mrf.mxu0
        %v1749 = vadd.f32 %v1656, %v1748
        %1750 = vmatmul.bf16.gmra.mxu0 %v1693
        %v1751 = vpop.f32.mrf.mxu0
        %v1752 = vadd.f32 %v1656, %v1751
        %v1753 = vpop.f32.mrf.mxu0
        %v1754 = vadd.f32 %v1656, %v1753
        %1755 = vmatmul.bf16.gmra.mxu0 %v1696
        %v1756 = vpop.f32.mrf.mxu0
        %v1757 = vadd.f32 %v1656, %v1756
        %v1758 = vpop.f32.mrf.mxu0
        %v1759 = vadd.f32 %v1656, %v1758
        %1760 = vmatmul.bf16.gmra.mxu0 %v1699
        %v1761 = vpop.f32.mrf.mxu0
        %v1762 = vadd.f32 %v1656, %v1761
        %v1763 = vpop.f32.mrf.mxu0
        %v1764 = vadd.f32 %v1656, %v1763
        %1765 = vmatmul.bf16.gmra.mxu0 %v1702
        %v1766 = vpop.f32.mrf.mxu0
        %v1767 = vadd.f32 %v1656, %v1766
        %v1768 = vpop.f32.mrf.mxu0
        %v1769 = vadd.f32 %v1656, %v1768
        %1770 = vmatmul.bf16.gmra.mxu0 %v1705
        %v1771 = vpop.f32.mrf.mxu0
        %v1772 = vadd.f32 %v1656, %v1771
        %v1773 = vpop.f32.mrf.mxu0
        %v1774 = vadd.f32 %v1656, %v1773
        %1775 = vdwg.mxu0
        %v1776 = vtanh.pop %v1717
        %v1777 = vtanh.pop %v1719
        %v1778 = vtanh.pop %v1722
        %v1779 = vtanh.pop %v1724
        %v1780 = vtanh.pop %v1727
        %v1781 = vtanh.pop %v1729
        %v1782 = vtanh.pop %v1732
        %v1783 = vtanh.pop %v1734
        %v1784 = vtanh.pop %v1737
        %v1785 = vtanh.pop %v1739
        %v1786 = vtanh.pop %v1742
        %v1787 = vtanh.pop %v1744
        %v1788 = vtanh.pop %v1747
        %v1789 = vtanh.pop %v1749
        %v1790 = vtanh.pop %v1752
        %v1791 = vtanh.pop %v1754
        %v1792 = vtanh.pop %v1757
        %v1793 = vtanh.pop %v1759
        %v1794 = vtanh.pop %v1762
        %v1795 = vtanh.pop %v1764
        %v1796 = vtanh.pop %v1767
        %v1797 = vtanh.pop %v1769
        %v1798 = vtanh.pop %v1772
        %v1799 = vtanh.pop %v1774
        %v1800 = vpack.c.bf16 %v1777, %v1776
        %v1801 = vpack.c.bf16 %v1779, %v1778
        %v1802 = vpack.c.bf16 %v1781, %v1780
        %v1803 = vpack.c.bf16 %v1783, %v1782
        %v1804 = vpack.c.bf16 %v1785, %v1784
        %v1805 = vpack.c.bf16 %v1787, %v1786
        %v1806 = vpack.c.bf16 %v1789, %v1788
        %v1807 = vpack.c.bf16 %v1791, %v1790
        %v1808 = vpack.c.bf16 %v1793, %v1792
        %v1809 = vpack.c.bf16 %v1795, %v1794
        %v1810 = vpack.c.bf16 %v1797, %v1796
        %v1811 = vpack.c.bf16 %v1799, %v1798
        %v1812 = vld [vmem:[%s8] sm:$0xff]
        %v1813 = vld [vmem:[%s8 + $0x8] sm:$0xff]
        %v1814 = vld [vmem:[%s8 + $0x10] sm:$0xff]
        %v1815 = vld [vmem:[%s8 + $0x18] sm:$0xff]
        %v1816 = vld [vmem:[%s8 + $0x20] sm:$0xff]
        %v1817 = vld [vmem:[%s8 + $0x28] sm:$0xff]
        %v1818 = vld [vmem:[%s8 + $0x30] sm:$0xff]
        %v1819 = vld [vmem:[%s8 + $0x38] sm:$0xff]
        %v1820 = vld [vmem:[%s8 + $0x40] sm:$0xff]
        %v1821 = vld [vmem:[%s8 + $0x48] sm:$0xff]
        %v1822 = vld [vmem:[%s8 + $0x50] sm:$0xff]
        %v1823 = vld [vmem:[%s8 + $0x58] sm:$0xff]
        %v1824 = vld [vmem:[%s8 + $0x60] sm:$0xff]
        %v1825 = vld [vmem:[%s8 + $0x68] sm:$0xff]
        %v1826 = vld [vmem:[%s8 + $0x70] sm:$0xff]
        %v1827 = vld [vmem:[%s8 + $0x78] sm:$0xff]
        %v1828 = vld [vmem:[%s9] sm:$0x3]
        %v1830 = vperm.slane %v1828, 0
        %v1831 = vperm.slane %v1828, 1
        %v1850 = vunpack.c.l.b16 %v1812
        %v1851 = vunpack.c.h.b16 %v1812
        %v1852 = vunpack.c.l.b16 %v1813
        %v1853 = vunpack.c.h.b16 %v1813
        %v1854 = vunpack.c.l.b16 %v1814
        %v1855 = vunpack.c.h.b16 %v1814
        %v1856 = vunpack.c.l.b16 %v1815
        %v1857 = vunpack.c.h.b16 %v1815
        %v1858 = vunpack.c.l.b16 %v1816
        %v1859 = vunpack.c.h.b16 %v1816
        %v1860 = vunpack.c.l.b16 %v1817
        %v1861 = vunpack.c.h.b16 %v1817
        %v1862 = vunpack.c.l.b16 %v1818
        %v1863 = vunpack.c.h.b16 %v1818
        %v1864 = vunpack.c.l.b16 %v1819
        %v1865 = vunpack.c.h.b16 %v1819
        %v1866 = vunpack.c.l.b16 %v1820
        %v1867 = vunpack.c.h.b16 %v1820
        %v1868 = vunpack.c.l.b16 %v1821
        %v1869 = vunpack.c.h.b16 %v1821
        %v1870 = vunpack.c.l.b16 %v1822
        %v1871 = vunpack.c.h.b16 %v1822
        %v1872 = vunpack.c.l.b16 %v1823
        %v1873 = vunpack.c.h.b16 %v1823
        %v1874 = vunpack.c.l.b16 %v1824
        %v1875 = vunpack.c.h.b16 %v1824
        %v1876 = vunpack.c.l.b16 %v1825
        %v1877 = vunpack.c.h.b16 %v1825
        %v1878 = vunpack.c.l.b16 %v1826
        %v1879 = vunpack.c.h.b16 %v1826
        %v1880 = vunpack.c.l.b16 %v1827
        %v1881 = vunpack.c.h.b16 %v1827
        %v1882 = vpack.c.b16 %v1852, %v1850
        %v1883 = vpack.c.b16 %v1853, %v1851
        %v1884 = vpack.c.b16 %v1856, %v1854
        %v1885 = vpack.c.b16 %v1857, %v1855
        %v1886 = vpack.c.b16 %v1860, %v1858
        %v1887 = vpack.c.b16 %v1861, %v1859
        %v1888 = vpack.c.b16 %v1864, %v1862
        %v1889 = vpack.c.b16 %v1865, %v1863
        %v1890 = vpack.c.b16 %v1868, %v1866
        %v1891 = vpack.c.b16 %v1869, %v1867
        %v1892 = vpack.c.b16 %v1872, %v1870
        %v1893 = vpack.c.b16 %v1873, %v1871
        %v1894 = vpack.c.b16 %v1876, %v1874
        %v1895 = vpack.c.b16 %v1877, %v1875
        %v1896 = vpack.c.b16 %v1880, %v1878
        %v1897 = vpack.c.b16 %v1881, %v1879
        %1914 = vmatpush.bf16.msra.mxu0 %v1896
        %1915 = vmatpush.bf16.msra.mxu0 %v1894
        %1916 = vmatpush.bf16.msra.mxu0 %v1892
        %1917 = vmatpush.bf16.msra.mxu0 %v1890
        %1918 = vmatpush.bf16.msra.mxu0 %v1888
        %1919 = vmatpush.bf16.msra.mxu0 %v1886
        %1920 = vmatpush.bf16.msra.mxu0 %v1884
        %1921 = vmatpush.bf16.msra.mxu0 %v1882
        %1922 = vmatmul.bf16.gmra.mxu0 %v1800
        %v1923 = vpop.f32.mrf.mxu0
        %v1924 = vadd.f32 %v1830, %v1923
        %v1925 = vpop.f32.mrf.mxu0
        %v1926 = vadd.f32 %v1830, %v1925
        %1927 = vmatmul.bf16.gmra.mxu0 %v1801
        %v1928 = vpop.f32.mrf.mxu0
        %v1929 = vadd.f32 %v1830, %v1928
        %v1930 = vpop.f32.mrf.mxu0
        %v1931 = vadd.f32 %v1830, %v1930
        %1932 = vmatmul.bf16.gmra.mxu0 %v1802
        %v1933 = vpop.f32.mrf.mxu0
        %v1934 = vadd.f32 %v1830, %v1933
        %v1935 = vpop.f32.mrf.mxu0
        %v1936 = vadd.f32 %v1830, %v1935
        %1937 = vmatmul.bf16.gmra.mxu0 %v1803
        %v1938 = vpop.f32.mrf.mxu0
        %v1939 = vadd.f32 %v1830, %v1938
        %v1940 = vpop.f32.mrf.mxu0
        %v1941 = vadd.f32 %v1830, %v1940
        %1942 = vmatmul.bf16.gmra.mxu0 %v1804
        %v1943 = vpop.f32.mrf.mxu0
        %v1944 = vadd.f32 %v1830, %v1943
        %v1945 = vpop.f32.mrf.mxu0
        %v1946 = vadd.f32 %v1830, %v1945
        %1947 = vmatmul.bf16.gmra.mxu0 %v1805
        %v1948 = vpop.f32.mrf.mxu0
        %v1949 = vadd.f32 %v1830, %v1948
        %v1950 = vpop.f32.mrf.mxu0
        %v1951 = vadd.f32 %v1830, %v1950
        %1952 = vmatmul.bf16.gmra.mxu0 %v1806
        %v1953 = vpop.f32.mrf.mxu0
        %v1954 = vadd.f32 %v1830, %v1953
        %v1955 = vpop.f32.mrf.mxu0
        %v1956 = vadd.f32 %v1830, %v1955
        %1957 = vmatmul.bf16.gmra.mxu0 %v1807
        %v1958 = vpop.f32.mrf.mxu0
        %v1959 = vadd.f32 %v1830, %v1958
        %v1960 = vpop.f32.mrf.mxu0
        %v1961 = vadd.f32 %v1830, %v1960
        %1962 = vmatmul.bf16.gmra.mxu0 %v1808
        %v1963 = vpop.f32.mrf.mxu0
        %v1964 = vadd.f32 %v1830, %v1963
        %v1965 = vpop.f32.mrf.mxu0
        %v1966 = vadd.f32 %v1830, %v1965
        %1967 = vmatmul.bf16.gmra.mxu0 %v1809
        %v1968 = vpop.f32.mrf.mxu0
        %v1969 = vadd.f32 %v1830, %v1968
        %v1970 = vpop.f32.mrf.mxu0
        %v1971 = vadd.f32 %v1830, %v1970
        %1972 = vmatmul.bf16.gmra.mxu0 %v1810
        %v1973 = vpop.f32.mrf.mxu0
        %v1974 = vadd.f32 %v1830, %v1973
        %v1975 = vpop.f32.mrf.mxu0
        %v1976 = vadd.f32 %v1830, %v1975
        %1977 = vmatmul.bf16.gmra.mxu0 %v1811
        %v1978 = vpop.f32.mrf.mxu0
        %v1979 = vadd.f32 %v1830, %v1978
        %v1980 = vpop.f32.mrf.mxu0
        %v1981 = vadd.f32 %v1830, %v1980
        %1982 = vdwg.mxu0
        %1983 = vmatpush.bf16.msra.mxu0 %v1897
        %1984 = vmatpush.bf16.msra.mxu0 %v1895
        %1985 = vmatpush.bf16.msra.mxu0 %v1893
        %1986 = vmatpush.bf16.msra.mxu0 %v1891
        %1987 = vmatpush.bf16.msra.mxu0 %v1889
        %1988 = vmatpush.bf16.msra.mxu0 %v1887
        %1989 = vmatpush.bf16.msra.mxu0 %v1885
        %1990 = vmatpush.bf16.msra.mxu0 %v1883
        %1991 = vmatmul.bf16.gmra.mxu0 %v1800
        %v1992 = vpop.f32.mrf.mxu0
        %v1993 = vadd.f32 %v1831, %v1992
        %v1994 = vpop.f32.mrf.mxu0
        %v1995 = vadd.f32 %v1831, %v1994
        %1996 = vmatmul.bf16.gmra.mxu0 %v1801
        %v1997 = vpop.f32.mrf.mxu0
        %v1998 = vadd.f32 %v1831, %v1997
        %v1999 = vpop.f32.mrf.mxu0
        %v2000 = vadd.f32 %v1831, %v1999
        %2001 = vmatmul.bf16.gmra.mxu0 %v1802
        %v2002 = vpop.f32.mrf.mxu0
        %v2003 = vadd.f32 %v1831, %v2002
        %v2004 = vpop.f32.mrf.mxu0
        %v2005 = vadd.f32 %v1831, %v2004
        %2006 = vmatmul.bf16.gmra.mxu0 %v1803
        %v2007 = vpop.f32.mrf.mxu0
        %v2008 = vadd.f32 %v1831, %v2007
        %v2009 = vpop.f32.mrf.mxu0
        %v2010 = vadd.f32 %v1831, %v2009
        %2011 = vmatmul.bf16.gmra.mxu0 %v1804
        %v2012 = vpop.f32.mrf.mxu0
        %v2013 = vadd.f32 %v1831, %v2012
        %v2014 = vpop.f32.mrf.mxu0
        %v2015 = vadd.f32 %v1831, %v2014
        %2016 = vmatmul.bf16.gmra.mxu0 %v1805
        %v2017 = vpop.f32.mrf.mxu0
        %v2018 = vadd.f32 %v1831, %v2017
        %v2019 = vpop.f32.mrf.mxu0
        %v2020 = vadd.f32 %v1831, %v2019
        %2021 = vmatmul.bf16.gmra.mxu0 %v1806
        %v2022 = vpop.f32.mrf.mxu0
        %v2023 = vadd.f32 %v1831, %v2022
        %v2024 = vpop.f32.mrf.mxu0
        %v2025 = vadd.f32 %v1831, %v2024
        %2026 = vmatmul.bf16.gmra.mxu0 %v1807
        %v2027 = vpop.f32.mrf.mxu0
        %v2028 = vadd.f32 %v1831, %v2027
        %v2029 = vpop.f32.mrf.mxu0
        %v2030 = vadd.f32 %v1831, %v2029
        %2031 = vmatmul.bf16.gmra.mxu0 %v1808
        %v2032 = vpop.f32.mrf.mxu0
        %v2033 = vadd.f32 %v1831, %v2032
        %v2034 = vpop.f32.mrf.mxu0
        %v2035 = vadd.f32 %v1831, %v2034
        %2036 = vmatmul.bf16.gmra.mxu0 %v1809
        %v2037 = vpop.f32.mrf.mxu0
        %v2038 = vadd.f32 %v1831, %v2037
        %v2039 = vpop.f32.mrf.mxu0
        %v2040 = vadd.f32 %v1831, %v2039
        %2041 = vmatmul.bf16.gmra.mxu0 %v1810
        %v2042 = vpop.f32.mrf.mxu0
        %v2043 = vadd.f32 %v1831, %v2042
        %v2044 = vpop.f32.mrf.mxu0
        %v2045 = vadd.f32 %v1831, %v2044
        %2046 = vmatmul.bf16.gmra.mxu0 %v1811
        %v2047 = vpop.f32.mrf.mxu0
        %v2048 = vadd.f32 %v1831, %v2047
        %v2049 = vpop.f32.mrf.mxu0
        %v2050 = vadd.f32 %v1831, %v2049
        %2051 = vdwg.mxu0
        %v2052 = vtanh.pop %v1924
        %v2053 = vtanh.pop %v1993
        %v2054 = vtanh.pop %v1926
        %v2055 = vtanh.pop %v1995
        %v2056 = vtanh.pop %v1929
        %v2057 = vtanh.pop %v1998
        %v2058 = vtanh.pop %v1931
        %v2059 = vtanh.pop %v2000
        %v2060 = vtanh.pop %v1934
        %v2061 = vtanh.pop %v2003
        %v2062 = vtanh.pop %v1936
        %v2063 = vtanh.pop %v2005
        %v2064 = vtanh.pop %v1939
        %v2065 = vtanh.pop %v2008
        %v2066 = vtanh.pop %v1941
        %v2067 = vtanh.pop %v2010
        %v2068 = vtanh.pop %v1944
        %v2069 = vtanh.pop %v2013
        %v2070 = vtanh.pop %v1946
        %v2071 = vtanh.pop %v2015
        %v2072 = vtanh.pop %v1949
        %v2073 = vtanh.pop %v2018
        %v2074 = vtanh.pop %v1951
        %v2075 = vtanh.pop %v2020
        %v2076 = vtanh.pop %v1954
        %v2077 = vtanh.pop %v2023
        %v2078 = vtanh.pop %v1956
        %v2079 = vtanh.pop %v2025
        %v2080 = vtanh.pop %v1959
        %v2081 = vtanh.pop %v2028
        %v2082 = vtanh.pop %v1961
        %v2083 = vtanh.pop %v2030
        %v2084 = vtanh.pop %v1964
        %v2085 = vtanh.pop %v2033
        %v2086 = vtanh.pop %v1966
        %v2087 = vtanh.pop %v2035
        %v2088 = vtanh.pop %v1969
        %v2089 = vtanh.pop %v2038
        %v2090 = vtanh.pop %v1971
        %v2091 = vtanh.pop %v2040
        %v2092 = vtanh.pop %v1974
        %v2093 = vtanh.pop %v2043
        %v2094 = vtanh.pop %v1976
        %v2095 = vtanh.pop %v2045
        %v2096 = vtanh.pop %v1979
        %v2097 = vtanh.pop %v2048
        %v2098 = vtanh.pop %v1981
        %v2099 = vtanh.pop %v2050
        %v2100 = vpack.c.bf16 %v2053, %v2052
        %v2101 = vpack.c.bf16 %v2055, %v2054
        %v2102 = vpack.c.bf16 %v2057, %v2056
        %v2103 = vpack.c.bf16 %v2059, %v2058
        %v2104 = vpack.c.bf16 %v2061, %v2060
        %v2105 = vpack.c.bf16 %v2063, %v2062
        %v2106 = vpack.c.bf16 %v2065, %v2064
        %v2107 = vpack.c.bf16 %v2067, %v2066
        %v2108 = vpack.c.bf16 %v2069, %v2068
        %v2109 = vpack.c.bf16 %v2071, %v2070
        %v2110 = vpack.c.bf16 %v2073, %v2072
        %v2111 = vpack.c.bf16 %v2075, %v2074
        %v2112 = vpack.c.bf16 %v2077, %v2076
        %v2113 = vpack.c.bf16 %v2079, %v2078
        %v2114 = vpack.c.bf16 %v2081, %v2080
        %v2115 = vpack.c.bf16 %v2083, %v2082
        %v2116 = vpack.c.bf16 %v2085, %v2084
        %v2117 = vpack.c.bf16 %v2087, %v2086
        %v2118 = vpack.c.bf16 %v2089, %v2088
        %v2119 = vpack.c.bf16 %v2091, %v2090
        %v2120 = vpack.c.bf16 %v2093, %v2092
        %v2121 = vpack.c.bf16 %v2095, %v2094
        %v2122 = vpack.c.bf16 %v2097, %v2096
        %v2123 = vpack.c.bf16 %v2099, %v2098
        %2124 = vst [vmem:[%s424] sm:$0xff] %v2100
        %2125 = vst [vmem:[%s424 + $0x8] sm:$0xff] %v2101
        %2126 = vst [vmem:[%s424 + $0x10] sm:$0xff] %v2102
        %2127 = vst [vmem:[%s424 + $0x18] sm:$0xff] %v2103
        %2128 = vst [vmem:[%s424 + $0x20] sm:$0xff] %v2104
        %2129 = vst [vmem:[%s424 + $0x28] sm:$0xff] %v2105
        %2130 = vst [vmem:[%s424 + $0x30] sm:$0xff] %v2106
        %2131 = vst [vmem:[%s424 + $0x38] sm:$0xff] %v2107
        %2132 = vst [vmem:[%s424 + $0x40] sm:$0xff] %v2108
        %2133 = vst [vmem:[%s424 + $0x48] sm:$0xff] %v2109
        %2134 = vst [vmem:[%s424 + $0x50] sm:$0xff] %v2110
        %2135 = vst [vmem:[%s424 + $0x58] sm:$0xff] %v2111
        %2136 = vst [vmem:[%s424 + $0x60] sm:$0xff] %v2112
        %2137 = vst [vmem:[%s424 + $0x68] sm:$0xff] %v2113
        %2138 = vst [vmem:[%s424 + $0x70] sm:$0xff] %v2114
        %2139 = vst [vmem:[%s424 + $0x78] sm:$0xff] %v2115
        %2140 = vst [vmem:[%s424 + $0x80] sm:$0xff] %v2116
        %2141 = vst [vmem:[%s424 + $0x88] sm:$0xff] %v2117
        %2142 = vst [vmem:[%s424 + $0x90] sm:$0xff] %v2118
        %2143 = vst [vmem:[%s424 + $0x98] sm:$0xff] %v2119
        %2144 = vst [vmem:[%s424 + $0xa0] sm:$0xff] %v2120
        %2145 = vst [vmem:[%s424 + $0xa8] sm:$0xff] %v2121
        %2146 = vst [vmem:[%s424 + $0xb0] sm:$0xff] %v2122
        %2147 = vst [vmem:[%s424 + $0xb8] sm:$0xff] %v2123
        %s2148 = sand.u32 %s257, 1
        %s2149 = scalar_lea.sflag [#allocation4], %s2148
        %s2150 = sand.u32 %s257, 1
        %s2151 = smul.addr %s2150, 192
        %s2152 = scalar_lea.vmem [#allocation5], %s2151
        %s2153 = smul.u32 24, %s29
        %p2154 = scmp.lt.s32.totalorder %s2153, 47
        %s2155 = scalar_select %p2154, %s2153, 47
        %s2156 = smul.addr %s2155, 8
        %s2157 = scalar_lea.vmem %s11, %s2156
        // Predicated region
        $region65: #{tpu_custom_call.1} parent=59 // pred_check
          %p2158 = pneg %p267
        $region66: #{tpu_custom_call.1} parent=59 // pred_check_branch
          %2160 = sbr.rel (%p2158) target = $region68
        $region67: #{tpu_custom_call.1} parent=59 // pred_region
          %s2161 = smul.u32 24, %s29
          %2163 = vsyncadd %s2149, 0
          %s2164 = smul.addr %s2161, 2
          %s2165 = smul.addr %s2164, 4
          %s2166 = scalar_lea.hbm %s10, %s2165
          %s2167 = sshll.u32 %s2152, 4
          %s2168 = int_to_ptr.vmem [resolvable:$true] %s2167
          %s2169 = sshll.u32 %s2166, 4
          %s2170 = int_to_ptr.hbm [resolvable:$true] %s2169
          %2175 = dma.vmem_to_hbm [thread:$0]  %s2168, 3072, %s2170, %s2149, 128, 128, 8
        $region68: #{tpu_custom_call.1} parent=59 // pred_fallthru
          _
        // Predicated region
        $region69: #{tpu_custom_call.1} parent=59 // pred_check
          %p2176 = pneg %p293
        $region70: #{tpu_custom_call.1} parent=59 // pred_check_branch
          %2178 = sbr.rel (%p2176) target = $region72
        $region71: #{tpu_custom_call.1} parent=59 // pred_region
          %s2179 = smul.u32 24, %s29
        $region72: #{tpu_custom_call.1} parent=59 // pred_fallthru
          _
      $region60: #{tpu_custom_call.1} parent=5 // pred_fallthru
        _
      %p2180 = scmp.le.s32.totalorder 2, %s24
      // Predicated region
      $region73: #{tpu_custom_call.1} parent=5 // pred_check
        %p2181 = pneg %p2180
      $region74: #{tpu_custom_call.1} parent=5 // pred_check_branch
        %2183 = sbr.rel (%p2181) target = $region76
      $region75: #{tpu_custom_call.1} parent=5 // pred_region
        %s2184 = ssub.s32 %s24, 2
        // Predicated region
        $region77: #{tpu_custom_call.1} parent=75 // pred_check
          %p2185 = pneg %p273
        $region78: #{tpu_custom_call.1} parent=75 // pred_check_branch
          %2187 = sbr.rel (%p2185) target = $region80
        $region79: #{tpu_custom_call.1} parent=75 // pred_region
          %s2188 = sand.u32 %s258, 1
          %s2189 = scalar_lea.sflag [#allocation4], %s2188
          %s2190 = sand.u32 %s258, 1
          %s2191 = smul.addr %s2190, 192
          %s2192 = scalar_lea.vmem [#allocation5], %s2191
          %2194 = dma.done %s2189, 3072
        $region80: #{tpu_custom_call.1} parent=75 // pred_fallthru
          _
        // Predicated region
        $region81: #{tpu_custom_call.1} parent=75 // pred_check
          %p2195 = pneg %p299
        $region82: #{tpu_custom_call.1} parent=75 // pred_check_branch
          %2197 = sbr.rel (%p2195) target = $region84
        $region83: #{tpu_custom_call.1} parent=75 // pred_region
          %s2198 = smul.u32 24, %s30
          %p2199 = scmp.lt.s32.totalorder %s2198, 47
          %s2200 = scalar_select %p2199, %s2198, 47
          %s2201 = smul.addr %s2200, 8
          %s2202 = scalar_lea.vmem %s11, %s2201
        $region84: #{tpu_custom_call.1} parent=75 // pred_fallthru
          _
      $region76: #{tpu_custom_call.1} parent=5 // pred_fallthru
        _
    $region6: #{tpu_custom_call.1} parent=1 // loop_footer
      %s28 = sadd.s32 1, %s24
    $region7: #{tpu_custom_call.1} parent=1 // loop_footer_branch
      %23 = sbr.rel target = $region3
    $region8: #{tpu_custom_call.1} parent=1 // loop_exit
      _
    %2203 = vsyncpa [#allocation3], 1
    %s2204 = scalar_lea.sflag [#allocation3], 1
    %2205 = vsyncpa %s2204, 1
    %2206 = vsyncpa [#allocation4], 1
    %s2207 = scalar_lea.sflag [#allocation4], 1
    %2208 = vsyncpa %s2207, 1

</llo_original>
